<compile_context>
chip_gen: v7x
topology: tpu7x:2x2x1
jax: 0.10.0
libtpu: 0.0.40
codegen_flags: <defaults>
</compile_context>

<pallas_src>
import functools

import jax
import jax.numpy as jnp
from jax.experimental import pallas as pl
from jax.experimental.pallas import tpu as pltpu


# ---------------------------------------------------------------------------
# Fused Bottleneck kernel: one batch image per grid step.
# ---------------------------------------------------------------------------
def _bottleneck_kernel(x_ref,
                       w1_ref, s1_ref, b1_ref,
                       w2_ref, s2_ref, b2_ref,
                       w3_ref, s3_ref, b3_ref,
                       out_ref, *, H, W):
    Cmid = w1_ref.shape[-1]

    x = x_ref[0]                                            # (H, W, Cin)

    # --- conv1 (1x1) + BN + ReLU: a pure channel matmul on the MXU ----------
    h1 = jnp.dot(x, w1_ref[...], preferred_element_type=jnp.float32)
    h1 = jnp.maximum(h1 * s1_ref[0] + b1_ref[0], 0.0)       # (H, W, Cmid) f32

    # --- conv2 (3x3, pad=1, stride=1) + BN + ReLU ----------------------------
    # Zero-pad the intermediate in-kernel (no HBM pad pass).
    zrow = jnp.zeros((1, W, Cmid), jnp.float32)
    zcol = jnp.zeros((H + 2, 1, Cmid), jnp.float32)
    hp = jnp.concatenate([zrow, h1, zrow], axis=0)          # (H+2, W,   Cmid)
    hp = jnp.concatenate([zcol, hp, zcol], axis=1)          # (H+2, W+2, Cmid)

    # im2col: fold the 9 taps into the contraction -> single K = 9*Cmid matmul.
    taps = [hp[dy:dy + H, dx:dx + W, :] for dy in range(3) for dx in range(3)]
    patches = jnp.concatenate(taps, axis=-1)                # (H, W, 9*Cmid)
    h2 = jnp.dot(patches, w2_ref[...], preferred_element_type=jnp.float32)
    h2 = jnp.maximum(h2 * s2_ref[0] + b2_ref[0], 0.0)       # (H, W, Cmid)

    # --- conv3 (1x1, expansion) + BN + residual + ReLU ------------------------
    h3 = jnp.dot(h2, w3_ref[...], preferred_element_type=jnp.float32)
    h3 = h3 * s3_ref[0] + b3_ref[0]
    h3 = h3 + x.astype(jnp.float32)                         # residual (no downsample)
    out_ref[...] = jnp.maximum(h3, 0.0)[None].astype(out_ref.dtype)


def bottleneck_fused(x_nhwc, params):
    """x_nhwc: (N,H,W,Cin).  Requires Cin == planes*expansion (no downsample)."""
    N, H, W, Cin = x_nhwc.shape
    Cmid = params["w1"].shape[-1]
    Cout = params["w3"].shape[-1]
    assert Cin == Cout, "no-downsample Bottleneck needs inplanes == planes*expansion"

    w1 = params["w1"]                                   # (Cin, Cmid)    1x1
    w2 = params["w2"].reshape(9 * Cmid, Cmid)           # HWIO -> (9*Cmid, Cmid)
    w3 = params["w3"]                                   # (Cmid, Cout)   1x1
    s1 = params["scale1"].reshape(1, Cmid); b1 = params["bias1"].reshape(1, Cmid)
    s2 = params["scale2"].reshape(1, Cmid); b2 = params["bias2"].reshape(1, Cmid)
    s3 = params["scale3"].reshape(1, Cout); b3 = params["bias3"].reshape(1, Cout)

    kernel = functools.partial(_bottleneck_kernel, H=H, W=W)

    flops = 2 * N * H * W * (Cin * Cmid + 9 * Cmid * Cmid + Cmid * Cout)
    bytes_accessed = 4 * (N * H * W * (Cin + Cout)
                          + Cin * Cmid + 9 * Cmid * Cmid + Cmid * Cout
                          + 2 * (2 * Cmid + Cout))

    return pl.pallas_call(
        kernel,
        out_shape=jax.ShapeDtypeStruct((N, H, W, Cout), x_nhwc.dtype),
        grid=(N,),
        in_specs=[
            pl.BlockSpec((1, H, W, Cin), lambda n: (n, 0, 0, 0)),
            pl.BlockSpec((Cin, Cmid), lambda n: (0, 0)),
            pl.BlockSpec((1, Cmid), lambda n: (0, 0)),
            pl.BlockSpec((1, Cmid), lambda n: (0, 0)),
            pl.BlockSpec((9 * Cmid, Cmid), lambda n: (0, 0)),
            pl.BlockSpec((1, Cmid), lambda n: (0, 0)),
            pl.BlockSpec((1, Cmid), lambda n: (0, 0)),
            pl.BlockSpec((Cmid, Cout), lambda n: (0, 0)),
            pl.BlockSpec((1, Cout), lambda n: (0, 0)),
            pl.BlockSpec((1, Cout), lambda n: (0, 0)),
        ],
        out_specs=pl.BlockSpec((1, H, W, Cout), lambda n: (n, 0, 0, 0)),
        compiler_params=pltpu.CompilerParams(
            dimension_semantics=("parallel",),
            vmem_limit_bytes=32 * 1024 * 1024),
        cost_estimate=pl.CostEstimate(
            flops=flops, transcendentals=0, bytes_accessed=bytes_accessed),
    )(x_nhwc, w1, s1, b1, w2, s2, b2, w3, s3, b3)


# ---------------------------------------------------------------------------
# Bottleneck parameters + forward (PyTorch NCHW boundary)
# ---------------------------------------------------------------------------
EXPANSION = 4


def init_bottleneck_params(key, inplanes, planes, dtype=jnp.float32):
    ks = jax.random.split(key, 15)
    eps = 1e-5

    def bn_fold(k0, k1, k2, k3, c):
        gamma = 1.0 + 0.1 * jax.random.normal(k0, (c,), dtype)
        beta = 0.1 * jax.random.normal(k1, (c,), dtype)
        running_mean = 0.05 * jax.random.normal(k2, (c,), dtype)
        running_var = jnp.abs(1.0 + 0.1 * jax.random.normal(k3, (c,), dtype))
        scale = gamma / jnp.sqrt(running_var + eps)
        bias = beta - running_mean * scale
        return scale, bias

    cout = planes * EXPANSION
    w1 = 0.1 * jax.random.normal(ks[0], (inplanes, planes), dtype)        # 1x1
    w2 = 0.1 * jax.random.normal(ks[1], (3, 3, planes, planes), dtype)    # 3x3 HWIO
    w3 = 0.1 * jax.random.normal(ks[2], (planes, cout), dtype)            # 1x1
    s1, b1 = bn_fold(ks[3], ks[4], ks[5], ks[6], planes)
    s2, b2 = bn_fold(ks[7], ks[8], ks[9], ks[10], planes)
    s3, b3 = bn_fold(ks[11], ks[12], ks[13], ks[14], cout)
    return dict(w1=w1, w2=w2, w3=w3,
                scale1=s1, bias1=b1, scale2=s2, bias2=b2, scale3=s3, bias3=b3)


def bottleneck_forward(x_nchw, params):
    x = jnp.transpose(x_nchw, (0, 2, 3, 1))   # NCHW -> NHWC (lane = channels)
    out = bottleneck_fused(x, params)
    return jnp.transpose(out, (0, 3, 1, 2))   # NHWC -> NCHW


# ---------------------------------------------------------------------------
# Pure-JAX reference (same math) for a correctness check
# ---------------------------------------------------------------------------
def bottleneck_reference(x_nchw, params):
    x = jnp.transpose(x_nchw, (0, 2, 3, 1))
    h = jnp.einsum("nhwc,cd->nhwd", x, params["w1"])
    h = jnp.maximum(h * params["scale1"] + params["bias1"], 0.0)
    h = jax.lax.conv_general_dilated(
        h, params["w2"], window_strides=(1, 1), padding="SAME",
        dimension_numbers=("NHWC", "HWIO", "NHWC"))
    h = jnp.maximum(h * params["scale2"] + params["bias2"], 0.0)
    o = jnp.einsum("nhwc,cd->nhwd", h, params["w3"])
    o = o * params["scale3"] + params["bias3"]
    o = jnp.maximum(o + x, 0.0)
    return jnp.transpose(o, (0, 3, 1, 2))


if __name__ == "__main__":
    key = jax.random.PRNGKey(0)
    kx, kp = jax.random.split(key)

    N, planes, H, W = 2, 4, 16, 16
    inplanes = planes * EXPANSION            # = 16: residual add requires this
    x = jax.random.normal(kx, (N, inplanes, H, W), jnp.float32)
    params = init_bottleneck_params(kp, inplanes=inplanes, planes=planes)

    out = jax.jit(bottleneck_forward)(x, params)
    out = jax.block_until_ready(out)

    ref = bottleneck_reference(x, params)
    assert out.shape == (N, inplanes, H, W)
    assert jnp.allclose(out, ref, atol=1e-3, rtol=1e-3), "mismatch vs reference"

    print("KERNEL_OK")
</pallas_src>

<mosaic_0001>
module attributes {stable_mosaic.version = 11 : i64} {
  func.func @_bottleneck_kernel(%arg0: i32, %arg1: memref<1x16x16x16xf32, #tpu.memory_space<vmem>>, %arg2: memref<16x4xf32, #tpu.memory_space<vmem>>, %arg3: memref<1x4xf32, #tpu.memory_space<vmem>>, %arg4: memref<1x4xf32, #tpu.memory_space<vmem>>, %arg5: memref<36x4xf32, #tpu.memory_space<vmem>>, %arg6: memref<1x4xf32, #tpu.memory_space<vmem>>, %arg7: memref<1x4xf32, #tpu.memory_space<vmem>>, %arg8: memref<4x16xf32, #tpu.memory_space<vmem>>, %arg9: memref<1x16xf32, #tpu.memory_space<vmem>>, %arg10: memref<1x16xf32, #tpu.memory_space<vmem>>, %arg11: memref<1x16x16x16xf32, #tpu.memory_space<vmem>>) attributes {dimension_semantics = [#tpu.dimension_semantics<parallel>], iteration_bounds = array<i64: 2>, scalar_prefetch = 0 : i64, scratch_operands = 0 : i64, tpu.core_type = #tpu.core_type<tc>, window_params = [{transform_indices = @transform_0, window_bounds = array<i64: 1, 16, 16, 16>}, {pipeline_mode = #tpu.pipeline_mode<synchronous>, transform_indices = @transform_1, window_bounds = array<i64: 16, 4>}, {pipeline_mode = #tpu.pipeline_mode<synchronous>, transform_indices = @transform_2, window_bounds = array<i64: 1, 4>}, {pipeline_mode = #tpu.pipeline_mode<synchronous>, transform_indices = @transform_3, window_bounds = array<i64: 1, 4>}, {pipeline_mode = #tpu.pipeline_mode<synchronous>, transform_indices = @transform_4, window_bounds = array<i64: 36, 4>}, {pipeline_mode = #tpu.pipeline_mode<synchronous>, transform_indices = @transform_5, window_bounds = array<i64: 1, 4>}, {pipeline_mode = #tpu.pipeline_mode<synchronous>, transform_indices = @transform_6, window_bounds = array<i64: 1, 4>}, {pipeline_mode = #tpu.pipeline_mode<synchronous>, transform_indices = @transform_7, window_bounds = array<i64: 4, 16>}, {pipeline_mode = #tpu.pipeline_mode<synchronous>, transform_indices = @transform_8, window_bounds = array<i64: 1, 16>}, {pipeline_mode = #tpu.pipeline_mode<synchronous>, transform_indices = @transform_9, window_bounds = array<i64: 1, 16>}, {transform_indices = @transform_10, window_bounds = array<i64: 1, 16, 16, 16>}]} {
    %c0 = arith.constant 0 : index
    %c0_0 = arith.constant 0 : index
    %c0_1 = arith.constant 0 : index
    %c0_2 = arith.constant 0 : index
    %0 = vector.load %arg1[%c0, %c0_0, %c0_1, %c0_2] : memref<1x16x16x16xf32, #tpu.memory_space<vmem>>, vector<1x16x16x16xf32>
    %1 = vector.shape_cast %0 : vector<1x16x16x16xf32> to vector<16x16x16xf32>
    %c0_3 = arith.constant 0 : index
    %c0_4 = arith.constant 0 : index
    %2 = vector.load %arg2[%c0_3, %c0_4] : memref<16x4xf32, #tpu.memory_space<vmem>>, vector<16x4xf32>
    %cst = arith.constant dense<0.000000e+00> : vector<16x16x4xf32>
    %3 = tpu.matmul %1, %2, %cst {dimension_numbers = #tpu.dot_dimension_numbers<[2], [0], [0, 1], [1], [0, 0, 0, 1, 1, 1], [], []>} : vector<16x16x16xf32>, vector<16x4xf32>, vector<16x16x4xf32> -> vector<16x16x4xf32>
    %c0_5 = arith.constant 0 : index
    %c0_6 = arith.constant 0 : index
    %4 = vector.load %arg3[%c0_5, %c0_6] : memref<1x4xf32, #tpu.memory_space<vmem>>, vector<1x4xf32>
    %5 = vector.shape_cast %4 : vector<1x4xf32> to vector<4xf32>
    %6 = vector.shape_cast %5 : vector<4xf32> to vector<1x1x4xf32>
    %7 = vector.broadcast %6 : vector<1x1x4xf32> to vector<16x16x4xf32>
    %8 = arith.mulf %3, %7 : vector<16x16x4xf32>
    %c0_7 = arith.constant 0 : index
    %c0_8 = arith.constant 0 : index
    %9 = vector.load %arg4[%c0_7, %c0_8] : memref<1x4xf32, #tpu.memory_space<vmem>>, vector<1x4xf32>
    %10 = vector.shape_cast %9 : vector<1x4xf32> to vector<4xf32>
    %11 = vector.shape_cast %10 : vector<4xf32> to vector<1x1x4xf32>
    %12 = vector.broadcast %11 : vector<1x1x4xf32> to vector<16x16x4xf32>
    %13 = arith.addf %8, %12 : vector<16x16x4xf32>
    %cst_9 = arith.constant 0.000000e+00 : f32
    %14 = vector.broadcast %cst_9 : f32 to vector<16x16x4xf32>
    %15 = arith.maximumf %13, %14 : vector<16x16x4xf32>
    %cst_10 = arith.constant 0.000000e+00 : f32
    %16 = vector.broadcast %cst_10 : f32 to vector<1x16x4xf32>
    %cst_11 = arith.constant 0.000000e+00 : f32
    %17 = vector.broadcast %cst_11 : f32 to vector<18x1x4xf32>
    %18 = tpu.concatenate %16, %15, %16 in 0 : vector<1x16x4xf32>, vector<16x16x4xf32>, vector<1x16x4xf32> -> vector<18x16x4xf32>
    %19 = tpu.concatenate %17, %18, %17 in 1 : vector<18x1x4xf32>, vector<18x16x4xf32>, vector<18x1x4xf32> -> vector<18x18x4xf32>
    %20 = vector.extract_strided_slice %19 {offsets = [0, 0, 0], sizes = [16, 16, 4], strides = [1, 1, 1]} : vector<18x18x4xf32> to vector<16x16x4xf32>
    %21 = vector.extract_strided_slice %19 {offsets = [0, 1, 0], sizes = [16, 16, 4], strides = [1, 1, 1]} : vector<18x18x4xf32> to vector<16x16x4xf32>
    %22 = vector.extract_strided_slice %19 {offsets = [0, 2, 0], sizes = [16, 16, 4], strides = [1, 1, 1]} : vector<18x18x4xf32> to vector<16x16x4xf32>
    %23 = vector.extract_strided_slice %19 {offsets = [1, 0, 0], sizes = [16, 16, 4], strides = [1, 1, 1]} : vector<18x18x4xf32> to vector<16x16x4xf32>
    %24 = vector.extract_strided_slice %19 {offsets = [1, 1, 0], sizes = [16, 16, 4], strides = [1, 1, 1]} : vector<18x18x4xf32> to vector<16x16x4xf32>
    %25 = vector.extract_strided_slice %19 {offsets = [1, 2, 0], sizes = [16, 16, 4], strides = [1, 1, 1]} : vector<18x18x4xf32> to vector<16x16x4xf32>
    %26 = vector.extract_strided_slice %19 {offsets = [2, 0, 0], sizes = [16, 16, 4], strides = [1, 1, 1]} : vector<18x18x4xf32> to vector<16x16x4xf32>
    %27 = vector.extract_strided_slice %19 {offsets = [2, 1, 0], sizes = [16, 16, 4], strides = [1, 1, 1]} : vector<18x18x4xf32> to vector<16x16x4xf32>
    %28 = vector.extract_strided_slice %19 {offsets = [2, 2, 0], sizes = [16, 16, 4], strides = [1, 1, 1]} : vector<18x18x4xf32> to vector<16x16x4xf32>
    %29 = tpu.concatenate %20, %21, %22, %23, %24, %25, %26, %27, %28 in 2 : vector<16x16x4xf32>, vector<16x16x4xf32>, vector<16x16x4xf32>, vector<16x16x4xf32>, vector<16x16x4xf32>, vector<16x16x4xf32>, vector<16x16x4xf32>, vector<16x16x4xf32>, vector<16x16x4xf32> -> vector<16x16x36xf32>
    %c0_12 = arith.constant 0 : index
    %c0_13 = arith.constant 0 : index
    %30 = vector.load %arg5[%c0_12, %c0_13] : memref<36x4xf32, #tpu.memory_space<vmem>>, vector<36x4xf32>
    %cst_14 = arith.constant dense<0.000000e+00> : vector<16x16x4xf32>
    %31 = tpu.matmul %29, %30, %cst_14 {dimension_numbers = #tpu.dot_dimension_numbers<[2], [0], [0, 1], [1], [0, 0, 0, 1, 1, 1], [], []>} : vector<16x16x36xf32>, vector<36x4xf32>, vector<16x16x4xf32> -> vector<16x16x4xf32>
    %c0_15 = arith.constant 0 : index
    %c0_16 = arith.constant 0 : index
    %32 = vector.load %arg6[%c0_15, %c0_16] : memref<1x4xf32, #tpu.memory_space<vmem>>, vector<1x4xf32>
    %33 = vector.shape_cast %32 : vector<1x4xf32> to vector<4xf32>
    %34 = vector.shape_cast %33 : vector<4xf32> to vector<1x1x4xf32>
    %35 = vector.broadcast %34 : vector<1x1x4xf32> to vector<16x16x4xf32>
    %36 = arith.mulf %31, %35 : vector<16x16x4xf32>
    %c0_17 = arith.constant 0 : index
    %c0_18 = arith.constant 0 : index
    %37 = vector.load %arg7[%c0_17, %c0_18] : memref<1x4xf32, #tpu.memory_space<vmem>>, vector<1x4xf32>
    %38 = vector.shape_cast %37 : vector<1x4xf32> to vector<4xf32>
    %39 = vector.shape_cast %38 : vector<4xf32> to vector<1x1x4xf32>
    %40 = vector.broadcast %39 : vector<1x1x4xf32> to vector<16x16x4xf32>
    %41 = arith.addf %36, %40 : vector<16x16x4xf32>
    %cst_19 = arith.constant 0.000000e+00 : f32
    %42 = vector.broadcast %cst_19 : f32 to vector<16x16x4xf32>
    %43 = arith.maximumf %41, %42 : vector<16x16x4xf32>
    %c0_20 = arith.constant 0 : index
    %c0_21 = arith.constant 0 : index
    %44 = vector.load %arg8[%c0_20, %c0_21] : memref<4x16xf32, #tpu.memory_space<vmem>>, vector<4x16xf32>
    %cst_22 = arith.constant dense<0.000000e+00> : vector<16x16x16xf32>
    %45 = tpu.matmul %43, %44, %cst_22 {dimension_numbers = #tpu.dot_dimension_numbers<[2], [0], [0, 1], [1], [0, 0, 0, 1, 1, 1], [], []>} : vector<16x16x4xf32>, vector<4x16xf32>, vector<16x16x16xf32> -> vector<16x16x16xf32>
    %c0_23 = arith.constant 0 : index
    %c0_24 = arith.constant 0 : index
    %46 = vector.load %arg9[%c0_23, %c0_24] : memref<1x16xf32, #tpu.memory_space<vmem>>, vector<1x16xf32>
    %47 = vector.shape_cast %46 : vector<1x16xf32> to vector<16xf32>
    %48 = vector.shape_cast %47 : vector<16xf32> to vector<1x1x16xf32>
    %49 = vector.broadcast %48 : vector<1x1x16xf32> to vector<16x16x16xf32>
    %50 = arith.mulf %45, %49 : vector<16x16x16xf32>
    %c0_25 = arith.constant 0 : index
    %c0_26 = arith.constant 0 : index
    %51 = vector.load %arg10[%c0_25, %c0_26] : memref<1x16xf32, #tpu.memory_space<vmem>>, vector<1x16xf32>
    %52 = vector.shape_cast %51 : vector<1x16xf32> to vector<16xf32>
    %53 = vector.shape_cast %52 : vector<16xf32> to vector<1x1x16xf32>
    %54 = vector.broadcast %53 : vector<1x1x16xf32> to vector<16x16x16xf32>
    %55 = arith.addf %50, %54 : vector<16x16x16xf32>
    %56 = arith.addf %55, %1 : vector<16x16x16xf32>
    %cst_27 = arith.constant 0.000000e+00 : f32
    %57 = vector.broadcast %cst_27 : f32 to vector<16x16x16xf32>
    %58 = arith.maximumf %56, %57 : vector<16x16x16xf32>
    %59 = vector.shape_cast %58 : vector<16x16x16xf32> to vector<1x16x16x16xf32>
    %c0_28 = arith.constant 0 : index
    %c0_29 = arith.constant 0 : index
    %c0_30 = arith.constant 0 : index
    %c0_31 = arith.constant 0 : index
    %60 = vector.load %arg11[%c0_28, %c0_29, %c0_30, %c0_31] : memref<1x16x16x16xf32, #tpu.memory_space<vmem>>, vector<1x16x16x16xf32>
    tpu.vector_store %arg11[%c0_28, %c0_29, %c0_30, %c0_31], %59 {strides = array<i32>} : memref<1x16x16x16xf32, #tpu.memory_space<vmem>>, vector<1x16x16x16xf32>,
    return
  }
  func.func @transform_0(%arg0: i32) -> (i32, i32, i32, i32) {
    %c0_i32 = arith.constant 0 : i32
    %c0_i32_0 = arith.constant 0 : i32
    %c0_i32_1 = arith.constant 0 : i32
    %c0_i32_2 = arith.constant 0 : i32
    return %arg0, %c0_i32, %c0_i32_0, %c0_i32_1 : i32, i32, i32, i32
  }
  func.func @transform_1(%arg0: i32) -> (i32, i32) {
    %c0_i32 = arith.constant 0 : i32
    %c0_i32_0 = arith.constant 0 : i32
    %c0_i32_1 = arith.constant 0 : i32
    return %c0_i32, %c0_i32_0 : i32, i32
  }
  func.func @transform_2(%arg0: i32) -> (i32, i32) {
    %c0_i32 = arith.constant 0 : i32
    %c0_i32_0 = arith.constant 0 : i32
    %c0_i32_1 = arith.constant 0 : i32
    return %c0_i32, %c0_i32_0 : i32, i32
  }
  func.func @transform_3(%arg0: i32) -> (i32, i32) {
    %c0_i32 = arith.constant 0 : i32
    %c0_i32_0 = arith.constant 0 : i32
    %c0_i32_1 = arith.constant 0 : i32
    return %c0_i32, %c0_i32_0 : i32, i32
  }
  func.func @transform_4(%arg0: i32) -> (i32, i32) {
    %c0_i32 = arith.constant 0 : i32
    %c0_i32_0 = arith.constant 0 : i32
    %c0_i32_1 = arith.constant 0 : i32
    return %c0_i32, %c0_i32_0 : i32, i32
  }
  func.func @transform_5(%arg0: i32) -> (i32, i32) {
    %c0_i32 = arith.constant 0 : i32
    %c0_i32_0 = arith.constant 0 : i32
    %c0_i32_1 = arith.constant 0 : i32
    return %c0_i32, %c0_i32_0 : i32, i32
  }
  func.func @transform_6(%arg0: i32) -> (i32, i32) {
    %c0_i32 = arith.constant 0 : i32
    %c0_i32_0 = arith.constant 0 : i32
    %c0_i32_1 = arith.constant 0 : i32
    return %c0_i32, %c0_i32_0 : i32, i32
  }
  func.func @transform_7(%arg0: i32) -> (i32, i32) {
    %c0_i32 = arith.constant 0 : i32
    %c0_i32_0 = arith.constant 0 : i32
    %c0_i32_1 = arith.constant 0 : i32
    return %c0_i32, %c0_i32_0 : i32, i32
  }
  func.func @transform_8(%arg0: i32) -> (i32, i32) {
    %c0_i32 = arith.constant 0 : i32
    %c0_i32_0 = arith.constant 0 : i32
    %c0_i32_1 = arith.constant 0 : i32
    return %c0_i32, %c0_i32_0 : i32, i32
  }
  func.func @transform_9(%arg0: i32) -> (i32, i32) {
    %c0_i32 = arith.constant 0 : i32
    %c0_i32_0 = arith.constant 0 : i32
    %c0_i32_1 = arith.constant 0 : i32
    return %c0_i32, %c0_i32_0 : i32, i32
  }
  func.func @transform_10(%arg0: i32) -> (i32, i32, i32, i32) {
    %c0_i32 = arith.constant 0 : i32
    %c0_i32_0 = arith.constant 0 : i32
    %c0_i32_1 = arith.constant 0 : i32
    %c0_i32_2 = arith.constant 0 : i32
    return %arg0, %c0_i32, %c0_i32_0, %c0_i32_1 : i32, i32, i32, i32
  }
}

</mosaic_0001>

<llo_original>
// kernel: bottleneck_forward.1
$region0: #{bottleneck_forward.1}
  #allocation0 [shape = 'u32[]', space=smem, size = 0x4, offset = 0x4, fixed_abs, tag = 'smem constant byte address 0x4 - core index']
  #allocation1 [shape = 'u32[144,128]{1,0:T(1,128)}', space=vmem, size = 0x12000, scoped, tag = 'internal scratch']
  %s0 = inlined_call_operand.vmem [shape: f32[2,16,16,16], index: 0, kind: input, shape index: {}]
  %s1 = inlined_call_operand.vmem [shape: f32[16,4], index: 1, kind: input, shape index: {}]
  %s2 = inlined_call_operand.vmem [shape: f32[1,4], index: 2, kind: input, shape index: {}]
  %s3 = inlined_call_operand.vmem [shape: f32[1,4], index: 3, kind: input, shape index: {}]
  %s4 = inlined_call_operand.vmem [shape: f32[36,4], index: 4, kind: input, shape index: {}]
  %s5 = inlined_call_operand.vmem [shape: f32[1,4], index: 5, kind: input, shape index: {}]
  %s6 = inlined_call_operand.vmem [shape: f32[1,4], index: 6, kind: input, shape index: {}]
  %s7 = inlined_call_operand.vmem [shape: f32[4,16], index: 7, kind: input, shape index: {}]
  %s8 = inlined_call_operand.vmem [shape: f32[1,16], index: 8, kind: input, shape index: {}]
  %s9 = inlined_call_operand.vmem [shape: f32[1,16], index: 9, kind: input, shape index: {}]
  %s10 = inlined_call_operand.vmem [shape: f32[2,16,16,16], index: 10, kind: output, shape index: {}]
  %s11 = sld [smem:[#allocation0]]
  $region73: #{bottleneck_forward.1} parent=0
    _
  %s13 = ssub.s32 1, %s11
  %s14 = scalar_select 0, %s13, %s11
  loop: start=0, step=1, limit=4
  $region2: #{bottleneck_forward.1} parent=0 // loop_pre_header
    _
  $region3: #{bottleneck_forward.1} parent=0 // loop_header
    %s16 = sphi 0, %s20
    %p17 = scmp.ge.s32.totalorder %s16, 4
    %s26 = sphi 0, %s28
    %s29 = sphi 0, %s26
    %s30 = sphi 0, %s29
    %s46 = sphi 0, %s30
    %s50 = sphi 0, %s50
    %s52 = sphi 0, %s50
    %s53 = sphi 0, %s52
    %s67 = sphi 0, %s53
    %s71 = sphi 0, %s71
    %s73 = sphi 0, %s71
    %s74 = sphi 0, %s73
    %s88 = sphi 0, %s74
    %s92 = sphi 0, %s92
    %s94 = sphi 0, %s92
    %s95 = sphi 0, %s94
    %s109 = sphi 0, %s95
    %s113 = sphi 0, %s113
    %s115 = sphi 0, %s113
    %s116 = sphi 0, %s115
    %s130 = sphi 0, %s116
    %s134 = sphi 0, %s134
    %s136 = sphi 0, %s134
    %s137 = sphi 0, %s136
    %s151 = sphi 0, %s137
    %s155 = sphi 0, %s155
    %s157 = sphi 0, %s155
    %s158 = sphi 0, %s157
    %s172 = sphi 0, %s158
    %s176 = sphi 0, %s176
    %s178 = sphi 0, %s176
    %s179 = sphi 0, %s178
    %s193 = sphi 0, %s179
    %s197 = sphi 0, %s197
    %s199 = sphi 0, %s197
    %s200 = sphi 0, %s199
    %s214 = sphi 0, %s200
    %s218 = sphi 0, %s218
    %s220 = sphi 0, %s218
    %s221 = sphi 0, %s220
    %s235 = sphi 0, %s221
    %s241 = sphi 0, %s243
    %s244 = sphi 0, %s241
    %s245 = sphi 0, %s244
    %s261 = sphi 0, %s245
  $region4: #{bottleneck_forward.1} parent=0 // loop_header_branch
    %19 = sbr.rel (%p17) target = $region8
  $region5: #{bottleneck_forward.1} parent=0 // loop_body
    %s21 = ssub.s32 %s16, 1
    %s22 = ssub.s32 %s16, 2
    %s23 = sadd.s32 %s16, 1
    %s24 = ssub.s32 %s16, %s23
    %p25 = scmp.eq.s32.totalorder %s24, 0
    %s27 = sadd.s32 %s26, 1
    %s28 = scalar_select %p25, %s26, %s27
    %p31 = pneg %p25
    %p32 = scmp.eq.s32.totalorder %s16, 1
    %p33 = por %p31, %p32
    %p34 = scmp.ne.s32.totalorder %s26, %s29
    %p35 = scmp.eq.s32.totalorder %s16, 0
    %p36 = por %p34, %p35
    %p37 = scmp.ne.s32.totalorder %s26, %s29
    %p38 = scmp.eq.s32.totalorder %s21, 1
    %p39 = por %p37, %p38
    %p40 = scmp.ne.s32.totalorder %s29, %s30
    %p41 = scmp.eq.s32.totalorder %s21, 0
    %p42 = por %p40, %p41
    %p43 = scmp.ne.s32.totalorder %s29, %s30
    %p44 = scmp.eq.s32.totalorder %s22, 1
    %p45 = por %p43, %p44
    %p47 = scmp.ne.s32.totalorder %s30, %s46
    %p48 = scmp.eq.s32.totalorder %s22, 0
    %p49 = por %p47, %p48
    %s51 = sadd.s32 %s50, 1
    %p54 = scmp.eq.s32.totalorder %s16, 1
    %p55 = scmp.ne.s32.totalorder %s50, %s52
    %p56 = scmp.eq.s32.totalorder %s16, 0
    %p57 = por %p55, %p56
    %p58 = scmp.ne.s32.totalorder %s50, %s52
    %p59 = scmp.eq.s32.totalorder %s21, 1
    %p60 = por %p58, %p59
    %p61 = scmp.ne.s32.totalorder %s52, %s53
    %p62 = scmp.eq.s32.totalorder %s21, 0
    %p63 = por %p61, %p62
    %p64 = scmp.ne.s32.totalorder %s52, %s53
    %p65 = scmp.eq.s32.totalorder %s22, 1
    %p66 = por %p64, %p65
    %p68 = scmp.ne.s32.totalorder %s53, %s67
    %p69 = scmp.eq.s32.totalorder %s22, 0
    %p70 = por %p68, %p69
    %s72 = sadd.s32 %s71, 1
    %p75 = scmp.eq.s32.totalorder %s16, 1
    %p76 = scmp.ne.s32.totalorder %s71, %s73
    %p77 = scmp.eq.s32.totalorder %s16, 0
    %p78 = por %p76, %p77
    %p79 = scmp.ne.s32.totalorder %s71, %s73
    %p80 = scmp.eq.s32.totalorder %s21, 1
    %p81 = por %p79, %p80
    %p82 = scmp.ne.s32.totalorder %s73, %s74
    %p83 = scmp.eq.s32.totalorder %s21, 0
    %p84 = por %p82, %p83
    %p85 = scmp.ne.s32.totalorder %s73, %s74
    %p86 = scmp.eq.s32.totalorder %s22, 1
    %p87 = por %p85, %p86
    %p89 = scmp.ne.s32.totalorder %s74, %s88
    %p90 = scmp.eq.s32.totalorder %s22, 0
    %p91 = por %p89, %p90
    %s93 = sadd.s32 %s92, 1
    %p96 = scmp.eq.s32.totalorder %s16, 1
    %p97 = scmp.ne.s32.totalorder %s92, %s94
    %p98 = scmp.eq.s32.totalorder %s16, 0
    %p99 = por %p97, %p98
    %p100 = scmp.ne.s32.totalorder %s92, %s94
    %p101 = scmp.eq.s32.totalorder %s21, 1
    %p102 = por %p100, %p101
    %p103 = scmp.ne.s32.totalorder %s94, %s95
    %p104 = scmp.eq.s32.totalorder %s21, 0
    %p105 = por %p103, %p104
    %p106 = scmp.ne.s32.totalorder %s94, %s95
    %p107 = scmp.eq.s32.totalorder %s22, 1
    %p108 = por %p106, %p107
    %p110 = scmp.ne.s32.totalorder %s95, %s109
    %p111 = scmp.eq.s32.totalorder %s22, 0
    %p112 = por %p110, %p111
    %s114 = sadd.s32 %s113, 1
    %p117 = scmp.eq.s32.totalorder %s16, 1
    %p118 = scmp.ne.s32.totalorder %s113, %s115
    %p119 = scmp.eq.s32.totalorder %s16, 0
    %p120 = por %p118, %p119
    %p121 = scmp.ne.s32.totalorder %s113, %s115
    %p122 = scmp.eq.s32.totalorder %s21, 1
    %p123 = por %p121, %p122
    %p124 = scmp.ne.s32.totalorder %s115, %s116
    %p125 = scmp.eq.s32.totalorder %s21, 0
    %p126 = por %p124, %p125
    %p127 = scmp.ne.s32.totalorder %s115, %s116
    %p128 = scmp.eq.s32.totalorder %s22, 1
    %p129 = por %p127, %p128
    %p131 = scmp.ne.s32.totalorder %s116, %s130
    %p132 = scmp.eq.s32.totalorder %s22, 0
    %p133 = por %p131, %p132
    %s135 = sadd.s32 %s134, 1
    %p138 = scmp.eq.s32.totalorder %s16, 1
    %p139 = scmp.ne.s32.totalorder %s134, %s136
    %p140 = scmp.eq.s32.totalorder %s16, 0
    %p141 = por %p139, %p140
    %p142 = scmp.ne.s32.totalorder %s134, %s136
    %p143 = scmp.eq.s32.totalorder %s21, 1
    %p144 = por %p142, %p143
    %p145 = scmp.ne.s32.totalorder %s136, %s137
    %p146 = scmp.eq.s32.totalorder %s21, 0
    %p147 = por %p145, %p146
    %p148 = scmp.ne.s32.totalorder %s136, %s137
    %p149 = scmp.eq.s32.totalorder %s22, 1
    %p150 = por %p148, %p149
    %p152 = scmp.ne.s32.totalorder %s137, %s151
    %p153 = scmp.eq.s32.totalorder %s22, 0
    %p154 = por %p152, %p153
    %s156 = sadd.s32 %s155, 1
    %p159 = scmp.eq.s32.totalorder %s16, 1
    %p160 = scmp.ne.s32.totalorder %s155, %s157
    %p161 = scmp.eq.s32.totalorder %s16, 0
    %p162 = por %p160, %p161
    %p163 = scmp.ne.s32.totalorder %s155, %s157
    %p164 = scmp.eq.s32.totalorder %s21, 1
    %p165 = por %p163, %p164
    %p166 = scmp.ne.s32.totalorder %s157, %s158
    %p167 = scmp.eq.s32.totalorder %s21, 0
    %p168 = por %p166, %p167
    %p169 = scmp.ne.s32.totalorder %s157, %s158
    %p170 = scmp.eq.s32.totalorder %s22, 1
    %p171 = por %p169, %p170
    %p173 = scmp.ne.s32.totalorder %s158, %s172
    %p174 = scmp.eq.s32.totalorder %s22, 0
    %p175 = por %p173, %p174
    %s177 = sadd.s32 %s176, 1
    %p180 = scmp.eq.s32.totalorder %s16, 1
    %p181 = scmp.ne.s32.totalorder %s176, %s178
    %p182 = scmp.eq.s32.totalorder %s16, 0
    %p183 = por %p181, %p182
    %p184 = scmp.ne.s32.totalorder %s176, %s178
    %p185 = scmp.eq.s32.totalorder %s21, 1
    %p186 = por %p184, %p185
    %p187 = scmp.ne.s32.totalorder %s178, %s179
    %p188 = scmp.eq.s32.totalorder %s21, 0
    %p189 = por %p187, %p188
    %p190 = scmp.ne.s32.totalorder %s178, %s179
    %p191 = scmp.eq.s32.totalorder %s22, 1
    %p192 = por %p190, %p191
    %p194 = scmp.ne.s32.totalorder %s179, %s193
    %p195 = scmp.eq.s32.totalorder %s22, 0
    %p196 = por %p194, %p195
    %s198 = sadd.s32 %s197, 1
    %p201 = scmp.eq.s32.totalorder %s16, 1
    %p202 = scmp.ne.s32.totalorder %s197, %s199
    %p203 = scmp.eq.s32.totalorder %s16, 0
    %p204 = por %p202, %p203
    %p205 = scmp.ne.s32.totalorder %s197, %s199
    %p206 = scmp.eq.s32.totalorder %s21, 1
    %p207 = por %p205, %p206
    %p208 = scmp.ne.s32.totalorder %s199, %s200
    %p209 = scmp.eq.s32.totalorder %s21, 0
    %p210 = por %p208, %p209
    %p211 = scmp.ne.s32.totalorder %s199, %s200
    %p212 = scmp.eq.s32.totalorder %s22, 1
    %p213 = por %p211, %p212
    %p215 = scmp.ne.s32.totalorder %s200, %s214
    %p216 = scmp.eq.s32.totalorder %s22, 0
    %p217 = por %p215, %p216
    %s219 = sadd.s32 %s218, 1
    %p222 = scmp.eq.s32.totalorder %s16, 1
    %p223 = scmp.ne.s32.totalorder %s218, %s220
    %p224 = scmp.eq.s32.totalorder %s16, 0
    %p225 = por %p223, %p224
    %p226 = scmp.ne.s32.totalorder %s218, %s220
    %p227 = scmp.eq.s32.totalorder %s21, 1
    %p228 = por %p226, %p227
    %p229 = scmp.ne.s32.totalorder %s220, %s221
    %p230 = scmp.eq.s32.totalorder %s21, 0
    %p231 = por %p229, %p230
    %p232 = scmp.ne.s32.totalorder %s220, %s221
    %p233 = scmp.eq.s32.totalorder %s22, 1
    %p234 = por %p232, %p233
    %p236 = scmp.ne.s32.totalorder %s221, %s235
    %p237 = scmp.eq.s32.totalorder %s22, 0
    %p238 = por %p236, %p237
    %s239 = ssub.s32 %s16, %s23
    %p240 = scmp.eq.s32.totalorder %s239, 0
    %s242 = sadd.s32 %s241, 1
    %s243 = scalar_select %p240, %s241, %s242
    %p246 = pneg %p240
    %p247 = scmp.eq.s32.totalorder %s16, 1
    %p248 = por %p246, %p247
    %p249 = scmp.ne.s32.totalorder %s241, %s244
    %p250 = scmp.eq.s32.totalorder %s16, 0
    %p251 = por %p249, %p250
    %p252 = scmp.ne.s32.totalorder %s241, %s244
    %p253 = scmp.eq.s32.totalorder %s21, 1
    %p254 = por %p252, %p253
    %p255 = scmp.ne.s32.totalorder %s244, %s245
    %p256 = scmp.eq.s32.totalorder %s21, 0
    %p257 = por %p255, %p256
    %p258 = scmp.ne.s32.totalorder %s244, %s245
    %p259 = scmp.eq.s32.totalorder %s22, 1
    %p260 = por %p258, %p259
    %p262 = scmp.ne.s32.totalorder %s245, %s261
    %p263 = scmp.eq.s32.totalorder %s22, 0
    %p264 = por %p262, %p263
    %p265 = scmp.le.s32.totalorder 1, %s16
    %p266 = scmp.lt.s32.totalorder %s16, 3
    %p267 = pnand %p265, %p266
    %p268 = pneg %p267
    // Predicated region
    $region9: #{bottleneck_forward.1} parent=5 // pred_check
      _
    $region10: #{bottleneck_forward.1} parent=5 // pred_check_branch
      %270 = sbr.rel (%p267) target = $region12
    $region11: #{bottleneck_forward.1} parent=5 // pred_region
      %s271 = ssub.s32 %s16, 1
      // Predicated region
      $region13: #{bottleneck_forward.1} parent=11 // pred_check
        %p272 = pneg %p63
      $region14: #{bottleneck_forward.1} parent=11 // pred_check_branch
        %274 = sbr.rel (%p272) target = $region16
      $region15: #{bottleneck_forward.1} parent=11 // pred_region
        _
      $region16: #{bottleneck_forward.1} parent=11 // pred_fallthru
        _
      // Predicated region
      $region17: #{bottleneck_forward.1} parent=11 // pred_check
        %p275 = pneg %p84
      $region18: #{bottleneck_forward.1} parent=11 // pred_check_branch
        %277 = sbr.rel (%p275) target = $region20
      $region19: #{bottleneck_forward.1} parent=11 // pred_region
        _
      $region20: #{bottleneck_forward.1} parent=11 // pred_fallthru
        _
      // Predicated region
      $region21: #{bottleneck_forward.1} parent=11 // pred_check
        %p278 = pneg %p105
      $region22: #{bottleneck_forward.1} parent=11 // pred_check_branch
        %280 = sbr.rel (%p278) target = $region24
      $region23: #{bottleneck_forward.1} parent=11 // pred_region
        _
      $region24: #{bottleneck_forward.1} parent=11 // pred_fallthru
        _
      // Predicated region
      $region25: #{bottleneck_forward.1} parent=11 // pred_check
        %p281 = pneg %p126
      $region26: #{bottleneck_forward.1} parent=11 // pred_check_branch
        %283 = sbr.rel (%p281) target = $region28
      $region27: #{bottleneck_forward.1} parent=11 // pred_region
        _
      $region28: #{bottleneck_forward.1} parent=11 // pred_fallthru
        _
      // Predicated region
      $region29: #{bottleneck_forward.1} parent=11 // pred_check
        %p284 = pneg %p147
      $region30: #{bottleneck_forward.1} parent=11 // pred_check_branch
        %286 = sbr.rel (%p284) target = $region32
      $region31: #{bottleneck_forward.1} parent=11 // pred_region
        _
      $region32: #{bottleneck_forward.1} parent=11 // pred_fallthru
        _
      // Predicated region
      $region33: #{bottleneck_forward.1} parent=11 // pred_check
        %p287 = pneg %p168
      $region34: #{bottleneck_forward.1} parent=11 // pred_check_branch
        %289 = sbr.rel (%p287) target = $region36
      $region35: #{bottleneck_forward.1} parent=11 // pred_region
        _
      $region36: #{bottleneck_forward.1} parent=11 // pred_fallthru
        _
      // Predicated region
      $region37: #{bottleneck_forward.1} parent=11 // pred_check
        %p290 = pneg %p189
      $region38: #{bottleneck_forward.1} parent=11 // pred_check_branch
        %292 = sbr.rel (%p290) target = $region40
      $region39: #{bottleneck_forward.1} parent=11 // pred_region
        _
      $region40: #{bottleneck_forward.1} parent=11 // pred_fallthru
        _
      // Predicated region
      $region41: #{bottleneck_forward.1} parent=11 // pred_check
        %p293 = pneg %p210
      $region42: #{bottleneck_forward.1} parent=11 // pred_check_branch
        %295 = sbr.rel (%p293) target = $region44
      $region43: #{bottleneck_forward.1} parent=11 // pred_region
        _
      $region44: #{bottleneck_forward.1} parent=11 // pred_fallthru
        _
      // Predicated region
      $region45: #{bottleneck_forward.1} parent=11 // pred_check
        %p296 = pneg %p231
      $region46: #{bottleneck_forward.1} parent=11 // pred_check_branch
        %298 = sbr.rel (%p296) target = $region48
      $region47: #{bottleneck_forward.1} parent=11 // pred_region
        _
      $region48: #{bottleneck_forward.1} parent=11 // pred_fallthru
        _
    $region12: #{bottleneck_forward.1} parent=5 // pred_fallthru
      _
    %p299 = scmp.lt.s32.totalorder %s16, 2
    // Predicated region
    $region49: #{bottleneck_forward.1} parent=5 // pred_check
      %p300 = pneg %p299
    $region50: #{bottleneck_forward.1} parent=5 // pred_check_branch
      %302 = sbr.rel (%p300) target = $region52
    $region51: #{bottleneck_forward.1} parent=5 // pred_region
      // Predicated region
      $region53: #{bottleneck_forward.1} parent=51 // pred_check
        %p303 = pneg %p36
      $region54: #{bottleneck_forward.1} parent=51 // pred_check_branch
        %305 = sbr.rel (%p303) target = $region56
      $region55: #{bottleneck_forward.1} parent=51 // pred_region
        %p306 = scmp.lt.s32.totalorder %s16, 1
        %s307 = scalar_select %p306, %s16, 1
        %s308 = smul.addr %s307, 32
        %s309 = smul.addr %s308, 8
        %s310 = scalar_lea.vmem %s0, %s309
      $region56: #{bottleneck_forward.1} parent=51 // pred_fallthru
        _
    $region52: #{bottleneck_forward.1} parent=5 // pred_fallthru
      _
    %p311 = scmp.le.s32.totalorder 1, %s16
    %p312 = scmp.lt.s32.totalorder %s16, 3
    %p313 = pnand %p311, %p312
    %p314 = pneg %p313
    // Predicated region
    $region57: #{bottleneck_forward.1} parent=5 // pred_check
      _
    $region58: #{bottleneck_forward.1} parent=5 // pred_check_branch
      %316 = sbr.rel (%p313) target = $region60
    $region59: #{bottleneck_forward.1} parent=5 // pred_region
      %s317 = ssub.s32 %s16, 1
      %p318 = scmp.lt.s32.totalorder %s21, 1
      %s319 = scalar_select %p318, %s21, 1
      %s320 = smul.addr %s319, 32
      %s321 = smul.addr %s320, 8
      %s322 = scalar_lea.vmem %s0, %s321
      %p323 = pneg %p42
      %p324 = pneg %p39
      %p325 = pneg %p63
      %p326 = pneg %p60
      %p327 = pneg %p84
      %p328 = pneg %p81
      %p329 = pneg %p105
      %p330 = pneg %p102
      %p331 = pneg %p126
      %p332 = pneg %p123
      %p333 = pneg %p147
      %p334 = pneg %p144
      %p335 = pneg %p168
      %p336 = pneg %p165
      %p337 = pneg %p189
      %p338 = pneg %p186
      %p339 = pneg %p210
      %p340 = pneg %p207
      %p341 = pneg %p231
      %p342 = pneg %p228
      %p343 = pneg %p257
      %p344 = pneg %p254
      %p345 = scmp.lt.s32.totalorder %s21, 1
      %s346 = scalar_select %p345, %s21, 1
      %s347 = smul.addr %s346, 32
      %s348 = smul.addr %s347, 8
      %s349 = scalar_lea.vmem %s10, %s348
      %p350 = scmp.lt.s32.totalorder %s21, 1
      %s351 = scalar_select %p350, %s21, 1
      %s352 = smul.addr %s351, 32
      %s353 = smul.addr %s352, 8
      %s354 = scalar_lea.vmem %s0, %s353
      %p355 = scmp.lt.s32.totalorder %s21, 1
      %s356 = scalar_select %p355, %s21, 1
      %s357 = smul.addr %s356, 32
      %s358 = smul.addr %s357, 8
      %s359 = scalar_lea.vmem %s10, %s358
      %v360 = vld [vmem:[%s354] sm:$0xff]
      %v361 = vld [vmem:[%s354 + $0x8] sm:$0xff]
      %v362 = vld [vmem:[%s354 + $0x10] sm:$0xff]
      %v363 = vld [vmem:[%s354 + $0x18] sm:$0xff]
      %v364 = vld [vmem:[%s354 + $0x20] sm:$0xff]
      %v365 = vld [vmem:[%s354 + $0x28] sm:$0xff]
      %v366 = vld [vmem:[%s354 + $0x30] sm:$0xff]
      %v367 = vld [vmem:[%s354 + $0x38] sm:$0xff]
      %v368 = vld [vmem:[%s354 + $0x40] sm:$0xff]
      %v369 = vld [vmem:[%s354 + $0x48] sm:$0xff]
      %v370 = vld [vmem:[%s354 + $0x50] sm:$0xff]
      %v371 = vld [vmem:[%s354 + $0x58] sm:$0xff]
      %v372 = vld [vmem:[%s354 + $0x60] sm:$0xff]
      %v373 = vld [vmem:[%s354 + $0x68] sm:$0xff]
      %v374 = vld [vmem:[%s354 + $0x70] sm:$0xff]
      %v375 = vld [vmem:[%s354 + $0x78] sm:$0xff]
      %v376 = vld [vmem:[%s354 + $0x80] sm:$0xff]
      %v377 = vld [vmem:[%s354 + $0x88] sm:$0xff]
      %v378 = vld [vmem:[%s354 + $0x90] sm:$0xff]
      %v379 = vld [vmem:[%s354 + $0x98] sm:$0xff]
      %v380 = vld [vmem:[%s354 + $0xa0] sm:$0xff]
      %v381 = vld [vmem:[%s354 + $0xa8] sm:$0xff]
      %v382 = vld [vmem:[%s354 + $0xb0] sm:$0xff]
      %v383 = vld [vmem:[%s354 + $0xb8] sm:$0xff]
      %v384 = vld [vmem:[%s354 + $0xc0] sm:$0xff]
      %v385 = vld [vmem:[%s354 + $0xc8] sm:$0xff]
      %v386 = vld [vmem:[%s354 + $0xd0] sm:$0xff]
      %v387 = vld [vmem:[%s354 + $0xd8] sm:$0xff]
      %v388 = vld [vmem:[%s354 + $0xe0] sm:$0xff]
      %v389 = vld [vmem:[%s354 + $0xe8] sm:$0xff]
      %v390 = vld [vmem:[%s354 + $0xf0] sm:$0xff]
      %v391 = vld [vmem:[%s354 + $0xf8] sm:$0xff]
      %v392 = vld [vmem:[%s1] sm:$0xff]
      %v393 = vld [vmem:[%s1 + $0x8] sm:$0xff]
      %vm394 = vcmask 130048
      %v396 = vsel %vm394, %v360, 0
      %v399 = vsel %vm394, %v361, 0
      %v402 = vsel %vm394, %v362, 0
      %v405 = vsel %vm394, %v363, 0
      %v408 = vsel %vm394, %v364, 0
      %v411 = vsel %vm394, %v365, 0
      %v414 = vsel %vm394, %v366, 0
      %v417 = vsel %vm394, %v367, 0
      %v420 = vsel %vm394, %v368, 0
      %v423 = vsel %vm394, %v369, 0
      %v426 = vsel %vm394, %v370, 0
      %v429 = vsel %vm394, %v371, 0
      %v432 = vsel %vm394, %v372, 0
      %v435 = vsel %vm394, %v373, 0
      %v438 = vsel %vm394, %v374, 0
      %v441 = vsel %vm394, %v375, 0
      %v444 = vsel %vm394, %v376, 0
      %v447 = vsel %vm394, %v377, 0
      %v450 = vsel %vm394, %v378, 0
      %v453 = vsel %vm394, %v379, 0
      %v456 = vsel %vm394, %v380, 0
      %v459 = vsel %vm394, %v381, 0
      %v462 = vsel %vm394, %v382, 0
      %v465 = vsel %vm394, %v383, 0
      %v468 = vsel %vm394, %v384, 0
      %v471 = vsel %vm394, %v385, 0
      %v474 = vsel %vm394, %v386, 0
      %v477 = vsel %vm394, %v387, 0
      %v480 = vsel %vm394, %v388, 0
      %v483 = vsel %vm394, %v389, 0
      %v486 = vsel %vm394, %v390, 0
      %v489 = vsel %vm394, %v391, 0
      %491 = vmatprep.subr.mxu0 0.0
      %492 = vmatpush1.msra.mxu0 %v392
      %493 = vmatprep.subr.mxu0 0.0
      %494 = vmatpush1.msra.mxu0 %v393
      %495 = vmatprep.subr.mxu0 0.0
      %496 = vmatpush1.msra.mxu0 0.0
      %497 = vmatprep.subr.mxu0 0.0
      %498 = vmatpush1.msra.mxu0 0.0
      %499 = vmatprep.subr.mxu0 0.0
      %500 = vmatpush1.msra.mxu0 0.0
      %501 = vmatprep.subr.mxu0 0.0
      %502 = vmatpush1.msra.mxu0 0.0
      %503 = vmatprep.subr.mxu0 0.0
      %504 = vmatpush1.msra.mxu0 0.0
      %505 = vmatprep.subr.mxu0 0.0
      %506 = vmatpush1.msra.mxu0 0.0
      %507 = vmatprep.subr.mxu0 0.0
      %508 = vmatpush1.msra.mxu0 0.0
      %509 = vmatprep.subr.mxu0 0.0
      %510 = vmatpush1.msra.mxu0 0.0
      %511 = vmatprep.subr.mxu0 0.0
      %512 = vmatpush1.msra.mxu0 0.0
      %513 = vmatprep.subr.mxu0 0.0
      %514 = vmatpush1.msra.mxu0 0.0
      %515 = vmatprep.subr.mxu0 0.0
      %516 = vmatpush1.msra.mxu0 0.0
      %517 = vmatprep.subr.mxu0 0.0
      %518 = vmatpush1.msra.mxu0 0.0
      %519 = vmatprep.subr.mxu0 0.0
      %520 = vmatpush1.msra.mxu0 0.0
      %521 = vmatprep.subr.mxu0 0.0
      %522 = vmatpush1.msra.mxu0 0.0
      %523 = vmatprep.subr.mxu0 0.0
      %524 = vmatpush1.msra.mxu0 0.0
      %525 = vmatprep.subr.mxu0 0.0
      %526 = vmatpush1.msra.mxu0 0.0
      %527 = vmatprep.subr.mxu0 0.0
      %528 = vmatpush1.msra.mxu0 0.0
      %529 = vmatprep.subr.mxu0 0.0
      %530 = vmatpush1.msra.mxu0 0.0
      %531 = vmatprep.subr.mxu0 0.0
      %532 = vmatpush1.msra.mxu0 0.0
      %533 = vmatprep.subr.mxu0 0.0
      %534 = vmatpush1.msra.mxu0 0.0
      %535 = vmatprep.subr.mxu0 0.0
      %536 = vmatpush1.msra.mxu0 0.0
      %537 = vmatprep.subr.mxu0 0.0
      %538 = vmatpush1.msra.mxu0 0.0
      %539 = vmatprep.subr.mxu0 0.0
      %540 = vmatpush1.msra.mxu0 0.0
      %541 = vmatprep.subr.mxu0 0.0
      %542 = vmatpush1.msra.mxu0 0.0
      %543 = vmatprep.subr.mxu0 0.0
      %544 = vmatpush1.msra.mxu0 0.0
      %545 = vmatprep.subr.mxu0 0.0
      %546 = vmatpush1.msra.mxu0 0.0
      %547 = vmatprep.subr.mxu0 0.0
      %548 = vmatpush1.msra.mxu0 0.0
      %549 = vmatprep.subr.mxu0 0.0
      %550 = vmatpush1.msra.mxu0 0.0
      %551 = vmatprep.subr.mxu0 0.0
      %552 = vmatpush1.msra.mxu0 0.0
      %553 = vmatprep.subr.mxu0 0.0
      %554 = vmatpush1.msra.mxu0 0.0
      %555 = vmatprep.mubr.f32.mxu0 0.0
      %556 = vmatmul.mubr.f32.gmra.mrb[0].mxu0 %v396
      %v557 = vpop.f32.mrb[0].mxu0
      %v558 = vadd.f32 0.0, %v557
      %v559 = vpop.f32.mrb[0].mxu0
      %560 = vmatprep.mubr.f32.mxu0 0.0
      %561 = vmatmul.mubr.f32.gmra.mrb[0].mxu0 %v399
      %v562 = vpop.f32.mrb[0].mxu0
      %v563 = vadd.f32 0.0, %v562
      %v564 = vpop.f32.mrb[0].mxu0
      %565 = vmatprep.mubr.f32.mxu0 0.0
      %566 = vmatmul.mubr.f32.gmra.mrb[0].mxu0 %v402
      %v567 = vpop.f32.mrb[0].mxu0
      %v568 = vadd.f32 0.0, %v567
      %v569 = vpop.f32.mrb[0].mxu0
      %570 = vmatprep.mubr.f32.mxu0 0.0
      %571 = vmatmul.mubr.f32.gmra.mrb[0].mxu0 %v405
      %v572 = vpop.f32.mrb[0].mxu0
      %v573 = vadd.f32 0.0, %v572
      %v574 = vpop.f32.mrb[0].mxu0
      %575 = vmatprep.mubr.f32.mxu0 0.0
      %576 = vmatmul.mubr.f32.gmra.mrb[0].mxu0 %v408
      %v577 = vpop.f32.mrb[0].mxu0
      %v578 = vadd.f32 0.0, %v577
      %v579 = vpop.f32.mrb[0].mxu0
      %580 = vmatprep.mubr.f32.mxu0 0.0
      %581 = vmatmul.mubr.f32.gmra.mrb[0].mxu0 %v411
      %v582 = vpop.f32.mrb[0].mxu0
      %v583 = vadd.f32 0.0, %v582
      %v584 = vpop.f32.mrb[0].mxu0
      %585 = vmatprep.mubr.f32.mxu0 0.0
      %586 = vmatmul.mubr.f32.gmra.mrb[0].mxu0 %v414
      %v587 = vpop.f32.mrb[0].mxu0
      %v588 = vadd.f32 0.0, %v587
      %v589 = vpop.f32.mrb[0].mxu0
      %590 = vmatprep.mubr.f32.mxu0 0.0
      %591 = vmatmul.mubr.f32.gmra.mrb[0].mxu0 %v417
      %v592 = vpop.f32.mrb[0].mxu0
      %v593 = vadd.f32 0.0, %v592
      %v594 = vpop.f32.mrb[0].mxu0
      %595 = vmatprep.mubr.f32.mxu0 0.0
      %596 = vmatmul.mubr.f32.gmra.mrb[0].mxu0 %v420
      %v597 = vpop.f32.mrb[0].mxu0
      %v598 = vadd.f32 0.0, %v597
      %v599 = vpop.f32.mrb[0].mxu0
      %600 = vmatprep.mubr.f32.mxu0 0.0
      %601 = vmatmul.mubr.f32.gmra.mrb[0].mxu0 %v423
      %v602 = vpop.f32.mrb[0].mxu0
      %v603 = vadd.f32 0.0, %v602
      %v604 = vpop.f32.mrb[0].mxu0
      %605 = vmatprep.mubr.f32.mxu0 0.0
      %606 = vmatmul.mubr.f32.gmra.mrb[0].mxu0 %v426
      %v607 = vpop.f32.mrb[0].mxu0
      %v608 = vadd.f32 0.0, %v607
      %v609 = vpop.f32.mrb[0].mxu0
      %610 = vmatprep.mubr.f32.mxu0 0.0
      %611 = vmatmul.mubr.f32.gmra.mrb[0].mxu0 %v429
      %v612 = vpop.f32.mrb[0].mxu0
      %v613 = vadd.f32 0.0, %v612
      %v614 = vpop.f32.mrb[0].mxu0
      %615 = vmatprep.mubr.f32.mxu0 0.0
      %616 = vmatmul.mubr.f32.gmra.mrb[0].mxu0 %v432
      %v617 = vpop.f32.mrb[0].mxu0
      %v618 = vadd.f32 0.0, %v617
      %v619 = vpop.f32.mrb[0].mxu0
      %620 = vmatprep.mubr.f32.mxu0 0.0
      %621 = vmatmul.mubr.f32.gmra.mrb[0].mxu0 %v435
      %v622 = vpop.f32.mrb[0].mxu0
      %v623 = vadd.f32 0.0, %v622
      %v624 = vpop.f32.mrb[0].mxu0
      %625 = vmatprep.mubr.f32.mxu0 0.0
      %626 = vmatmul.mubr.f32.gmra.mrb[0].mxu0 %v438
      %v627 = vpop.f32.mrb[0].mxu0
      %v628 = vadd.f32 0.0, %v627
      %v629 = vpop.f32.mrb[0].mxu0
      %630 = vmatprep.mubr.f32.mxu0 0.0
      %631 = vmatmul.mubr.f32.gmra.mrb[0].mxu0 %v441
      %v632 = vpop.f32.mrb[0].mxu0
      %v633 = vadd.f32 0.0, %v632
      %v634 = vpop.f32.mrb[0].mxu0
      %635 = vmatprep.mubr.f32.mxu0 0.0
      %636 = vmatmul.mubr.f32.gmra.mrb[0].mxu0 %v444
      %v637 = vpop.f32.mrb[0].mxu0
      %v638 = vadd.f32 0.0, %v637
      %v639 = vpop.f32.mrb[0].mxu0
      %640 = vmatprep.mubr.f32.mxu0 0.0
      %641 = vmatmul.mubr.f32.gmra.mrb[0].mxu0 %v447
      %v642 = vpop.f32.mrb[0].mxu0
      %v643 = vadd.f32 0.0, %v642
      %v644 = vpop.f32.mrb[0].mxu0
      %645 = vmatprep.mubr.f32.mxu0 0.0
      %646 = vmatmul.mubr.f32.gmra.mrb[0].mxu0 %v450
      %v647 = vpop.f32.mrb[0].mxu0
      %v648 = vadd.f32 0.0, %v647
      %v649 = vpop.f32.mrb[0].mxu0
      %650 = vmatprep.mubr.f32.mxu0 0.0
      %651 = vmatmul.mubr.f32.gmra.mrb[0].mxu0 %v453
      %v652 = vpop.f32.mrb[0].mxu0
      %v653 = vadd.f32 0.0, %v652
      %v654 = vpop.f32.mrb[0].mxu0
      %655 = vmatprep.mubr.f32.mxu0 0.0
      %656 = vmatmul.mubr.f32.gmra.mrb[0].mxu0 %v456
      %v657 = vpop.f32.mrb[0].mxu0
      %v658 = vadd.f32 0.0, %v657
      %v659 = vpop.f32.mrb[0].mxu0
      %660 = vmatprep.mubr.f32.mxu0 0.0
      %661 = vmatmul.mubr.f32.gmra.mrb[0].mxu0 %v459
      %v662 = vpop.f32.mrb[0].mxu0
      %v663 = vadd.f32 0.0, %v662
      %v664 = vpop.f32.mrb[0].mxu0
      %665 = vmatprep.mubr.f32.mxu0 0.0
      %666 = vmatmul.mubr.f32.gmra.mrb[0].mxu0 %v462
      %v667 = vpop.f32.mrb[0].mxu0
      %v668 = vadd.f32 0.0, %v667
      %v669 = vpop.f32.mrb[0].mxu0
      %670 = vmatprep.mubr.f32.mxu0 0.0
      %671 = vmatmul.mubr.f32.gmra.mrb[0].mxu0 %v465
      %v672 = vpop.f32.mrb[0].mxu0
      %v673 = vadd.f32 0.0, %v672
      %v674 = vpop.f32.mrb[0].mxu0
      %675 = vmatprep.mubr.f32.mxu0 0.0
      %676 = vmatmul.mubr.f32.gmra.mrb[0].mxu0 %v468
      %v677 = vpop.f32.mrb[0].mxu0
      %v678 = vadd.f32 0.0, %v677
      %v679 = vpop.f32.mrb[0].mxu0
      %680 = vmatprep.mubr.f32.mxu0 0.0
      %681 = vmatmul.mubr.f32.gmra.mrb[0].mxu0 %v471
      %v682 = vpop.f32.mrb[0].mxu0
      %v683 = vadd.f32 0.0, %v682
      %v684 = vpop.f32.mrb[0].mxu0
      %685 = vmatprep.mubr.f32.mxu0 0.0
      %686 = vmatmul.mubr.f32.gmra.mrb[0].mxu0 %v474
      %v687 = vpop.f32.mrb[0].mxu0
      %v688 = vadd.f32 0.0, %v687
      %v689 = vpop.f32.mrb[0].mxu0
      %690 = vmatprep.mubr.f32.mxu0 0.0
      %691 = vmatmul.mubr.f32.gmra.mrb[0].mxu0 %v477
      %v692 = vpop.f32.mrb[0].mxu0
      %v693 = vadd.f32 0.0, %v692
      %v694 = vpop.f32.mrb[0].mxu0
      %695 = vmatprep.mubr.f32.mxu0 0.0
      %696 = vmatmul.mubr.f32.gmra.mrb[0].mxu0 %v480
      %v697 = vpop.f32.mrb[0].mxu0
      %v698 = vadd.f32 0.0, %v697
      %v699 = vpop.f32.mrb[0].mxu0
      %700 = vmatprep.mubr.f32.mxu0 0.0
      %701 = vmatmul.mubr.f32.gmra.mrb[0].mxu0 %v483
      %v702 = vpop.f32.mrb[0].mxu0
      %v703 = vadd.f32 0.0, %v702
      %v704 = vpop.f32.mrb[0].mxu0
      %705 = vmatprep.mubr.f32.mxu0 0.0
      %706 = vmatmul.mubr.f32.gmra.mrb[0].mxu0 %v486
      %v707 = vpop.f32.mrb[0].mxu0
      %v708 = vadd.f32 0.0, %v707
      %v709 = vpop.f32.mrb[0].mxu0
      %710 = vmatprep.mubr.f32.mxu0 0.0
      %711 = vmatmul.mubr.f32.gmra.mrb[0].mxu0 %v489
      %v712 = vpop.f32.mrb[0].mxu0
      %v713 = vadd.f32 0.0, %v712
      %v714 = vpop.f32.mrb[0].mxu0
      %715 = vdwg.mxu0
      %v716 = vld [vmem:[%s2] sm:$0x1]
      %v718 = vlaneseq
      %v719 = vshrl.u32 %v718, 7
      %v720 = vsub.s32 0, %v719
      %v721 = vrot.slane %v716, %v720
      %v723 = vmul.f32 %v558, %v721
      %v724 = vmul.f32 %v563, %v721
      %v725 = vmul.f32 %v568, %v721
      %v726 = vmul.f32 %v573, %v721
      %v727 = vmul.f32 %v578, %v721
      %v728 = vmul.f32 %v583, %v721
      %v729 = vmul.f32 %v588, %v721
      %v730 = vmul.f32 %v593, %v721
      %v731 = vmul.f32 %v598, %v721
      %v732 = vmul.f32 %v603, %v721
      %v733 = vmul.f32 %v608, %v721
      %v734 = vmul.f32 %v613, %v721
      %v735 = vmul.f32 %v618, %v721
      %v736 = vmul.f32 %v623, %v721
      %v737 = vmul.f32 %v628, %v721
      %v738 = vmul.f32 %v633, %v721
      %v739 = vmul.f32 %v638, %v721
      %v740 = vmul.f32 %v643, %v721
      %v741 = vmul.f32 %v648, %v721
      %v742 = vmul.f32 %v653, %v721
      %v743 = vmul.f32 %v658, %v721
      %v744 = vmul.f32 %v663, %v721
      %v745 = vmul.f32 %v668, %v721
      %v746 = vmul.f32 %v673, %v721
      %v747 = vmul.f32 %v678, %v721
      %v748 = vmul.f32 %v683, %v721
      %v749 = vmul.f32 %v688, %v721
      %v750 = vmul.f32 %v693, %v721
      %v751 = vmul.f32 %v698, %v721
      %v752 = vmul.f32 %v703, %v721
      %v753 = vmul.f32 %v708, %v721
      %v754 = vmul.f32 %v713, %v721
      %v755 = vld [vmem:[%s3] sm:$0x1]
      %v757 = vlaneseq
      %v758 = vshrl.u32 %v757, 7
      %v759 = vsub.s32 0, %v758
      %v760 = vrot.slane %v755, %v759
      %v762 = vadd.f32 %v723, %v760
      %v763 = vadd.f32 %v724, %v760
      %v764 = vadd.f32 %v725, %v760
      %v765 = vadd.f32 %v726, %v760
      %v766 = vadd.f32 %v727, %v760
      %v767 = vadd.f32 %v728, %v760
      %v768 = vadd.f32 %v729, %v760
      %v769 = vadd.f32 %v730, %v760
      %v770 = vadd.f32 %v731, %v760
      %v771 = vadd.f32 %v732, %v760
      %v772 = vadd.f32 %v733, %v760
      %v773 = vadd.f32 %v734, %v760
      %v774 = vadd.f32 %v735, %v760
      %v775 = vadd.f32 %v736, %v760
      %v776 = vadd.f32 %v737, %v760
      %v777 = vadd.f32 %v738, %v760
      %v778 = vadd.f32 %v739, %v760
      %v779 = vadd.f32 %v740, %v760
      %v780 = vadd.f32 %v741, %v760
      %v781 = vadd.f32 %v742, %v760
      %v782 = vadd.f32 %v743, %v760
      %v783 = vadd.f32 %v744, %v760
      %v784 = vadd.f32 %v745, %v760
      %v785 = vadd.f32 %v746, %v760
      %v786 = vadd.f32 %v747, %v760
      %v787 = vadd.f32 %v748, %v760
      %v788 = vadd.f32 %v749, %v760
      %v789 = vadd.f32 %v750, %v760
      %v790 = vadd.f32 %v751, %v760
      %v791 = vadd.f32 %v752, %v760
      %v792 = vadd.f32 %v753, %v760
      %v793 = vadd.f32 %v754, %v760
      %v794 = vmax.f32 %v762, 0.0
      %v795 = vmax.f32 %v763, 0.0
      %v796 = vmax.f32 %v764, 0.0
      %v797 = vmax.f32 %v765, 0.0
      %v798 = vmax.f32 %v766, 0.0
      %v799 = vmax.f32 %v767, 0.0
      %v800 = vmax.f32 %v768, 0.0
      %v801 = vmax.f32 %v769, 0.0
      %v802 = vmax.f32 %v770, 0.0
      %v803 = vmax.f32 %v771, 0.0
      %v804 = vmax.f32 %v772, 0.0
      %v805 = vmax.f32 %v773, 0.0
      %v806 = vmax.f32 %v774, 0.0
      %v807 = vmax.f32 %v775, 0.0
      %v808 = vmax.f32 %v776, 0.0
      %v809 = vmax.f32 %v777, 0.0
      %v810 = vmax.f32 %v778, 0.0
      %v811 = vmax.f32 %v779, 0.0
      %v812 = vmax.f32 %v780, 0.0
      %v813 = vmax.f32 %v781, 0.0
      %v814 = vmax.f32 %v782, 0.0
      %v815 = vmax.f32 %v783, 0.0
      %v816 = vmax.f32 %v784, 0.0
      %v817 = vmax.f32 %v785, 0.0
      %v818 = vmax.f32 %v786, 0.0
      %v819 = vmax.f32 %v787, 0.0
      %v820 = vmax.f32 %v788, 0.0
      %v821 = vmax.f32 %v789, 0.0
      %v822 = vmax.f32 %v790, 0.0
      %v823 = vmax.f32 %v791, 0.0
      %v824 = vmax.f32 %v792, 0.0
      %v825 = vmax.f32 %v793, 0.0
      %vm859 = vcmask 1040384
      %v860 = vrot.slane 0.0, 7
      %v861 = vsel %vm859, %v860, %v860
      %v862 = vrot.slane %v794, 7
      %v863 = vrot.slane %v795, 7
      %v864 = vsel %vm859, %v862, %v863
      %v865 = vrot.slane %v796, 7
      %v866 = vrot.slane %v797, 7
      %v867 = vsel %vm859, %v865, %v866
      %v868 = vrot.slane %v798, 7
      %v869 = vrot.slane %v799, 7
      %v870 = vsel %vm859, %v868, %v869
      %v871 = vrot.slane %v800, 7
      %v872 = vrot.slane %v801, 7
      %v873 = vsel %vm859, %v871, %v872
      %v874 = vrot.slane %v802, 7
      %v875 = vrot.slane %v803, 7
      %v876 = vsel %vm859, %v874, %v875
      %v877 = vrot.slane %v804, 7
      %v878 = vrot.slane %v805, 7
      %v879 = vsel %vm859, %v877, %v878
      %v880 = vrot.slane %v806, 7
      %v881 = vrot.slane %v807, 7
      %v882 = vsel %vm859, %v880, %v881
      %v883 = vrot.slane %v808, 7
      %v884 = vrot.slane %v809, 7
      %v885 = vsel %vm859, %v883, %v884
      %v886 = vrot.slane %v810, 7
      %v887 = vrot.slane %v811, 7
      %v888 = vsel %vm859, %v886, %v887
      %v889 = vrot.slane %v812, 7
      %v890 = vrot.slane %v813, 7
      %v891 = vsel %vm859, %v889, %v890
      %v892 = vrot.slane %v814, 7
      %v893 = vrot.slane %v815, 7
      %v894 = vsel %vm859, %v892, %v893
      %v895 = vrot.slane %v816, 7
      %v896 = vrot.slane %v817, 7
      %v897 = vsel %vm859, %v895, %v896
      %v898 = vrot.slane %v818, 7
      %v899 = vrot.slane %v819, 7
      %v900 = vsel %vm859, %v898, %v899
      %v901 = vrot.slane %v820, 7
      %v902 = vrot.slane %v821, 7
      %v903 = vsel %vm859, %v901, %v902
      %v904 = vrot.slane %v822, 7
      %v905 = vrot.slane %v823, 7
      %v906 = vsel %vm859, %v904, %v905
      %v907 = vrot.slane %v824, 7
      %v908 = vrot.slane %v825, 7
      %v909 = vsel %vm859, %v907, %v908
      %v959 = vsel %vm859, 0.0, %v860
      %v960 = vsel %vm859, 0.0, %v862
      %v961 = vsel %vm859, 0.0, %v865
      %v962 = vsel %vm859, 0.0, %v868
      %v963 = vsel %vm859, 0.0, %v871
      %v964 = vsel %vm859, 0.0, %v874
      %v965 = vsel %vm859, 0.0, %v877
      %v966 = vsel %vm859, 0.0, %v880
      %v967 = vsel %vm859, 0.0, %v883
      %v968 = vsel %vm859, 0.0, %v886
      %v969 = vsel %vm859, 0.0, %v889
      %v970 = vsel %vm859, 0.0, %v892
      %v971 = vsel %vm859, 0.0, %v895
      %v972 = vsel %vm859, 0.0, %v898
      %v973 = vsel %vm859, 0.0, %v901
      %v974 = vsel %vm859, 0.0, %v904
      %v975 = vsel %vm859, 0.0, %v907
      %v976 = vsel %vm859, %v860, 0.0
      %v977 = vsel %vm859, %v863, 0.0
      %v978 = vsel %vm859, %v866, 0.0
      %v979 = vsel %vm859, %v869, 0.0
      %v980 = vsel %vm859, %v872, 0.0
      %v981 = vsel %vm859, %v875, 0.0
      %v982 = vsel %vm859, %v878, 0.0
      %v983 = vsel %vm859, %v881, 0.0
      %v984 = vsel %vm859, %v884, 0.0
      %v985 = vsel %vm859, %v887, 0.0
      %v986 = vsel %vm859, %v890, 0.0
      %v987 = vsel %vm859, %v893, 0.0
      %v988 = vsel %vm859, %v896, 0.0
      %v989 = vsel %vm859, %v899, 0.0
      %v990 = vsel %vm859, %v902, 0.0
      %v991 = vsel %vm859, %v905, 0.0
      %v992 = vsel %vm859, %v908, 0.0
      %vm1025 = vcmask 1046528
      %v1026 = vrot.slane %v959, 1
      %v1027 = vrot.slane %v861, 1
      %v1028 = vsel %vm1025, %v1026, %v1027
      %v1029 = vrot.slane %v976, 1
      %v1030 = vsel %vm1025, %v1027, %v1029
      %v1031 = vrot.slane %v960, 1
      %v1032 = vrot.slane %v864, 1
      %v1033 = vsel %vm1025, %v1031, %v1032
      %v1034 = vrot.slane %v977, 1
      %v1035 = vsel %vm1025, %v1032, %v1034
      %v1036 = vrot.slane %v961, 1
      %v1037 = vrot.slane %v867, 1
      %v1038 = vsel %vm1025, %v1036, %v1037
      %v1039 = vrot.slane %v978, 1
      %v1040 = vsel %vm1025, %v1037, %v1039
      %v1041 = vrot.slane %v962, 1
      %v1042 = vrot.slane %v870, 1
      %v1043 = vsel %vm1025, %v1041, %v1042
      %v1044 = vrot.slane %v979, 1
      %v1045 = vsel %vm1025, %v1042, %v1044
      %v1046 = vrot.slane %v963, 1
      %v1047 = vrot.slane %v873, 1
      %v1048 = vsel %vm1025, %v1046, %v1047
      %v1049 = vrot.slane %v980, 1
      %v1050 = vsel %vm1025, %v1047, %v1049
      %v1051 = vrot.slane %v964, 1
      %v1052 = vrot.slane %v876, 1
      %v1053 = vsel %vm1025, %v1051, %v1052
      %v1054 = vrot.slane %v981, 1
      %v1055 = vsel %vm1025, %v1052, %v1054
      %v1056 = vrot.slane %v965, 1
      %v1057 = vrot.slane %v879, 1
      %v1058 = vsel %vm1025, %v1056, %v1057
      %v1059 = vrot.slane %v982, 1
      %v1060 = vsel %vm1025, %v1057, %v1059
      %v1061 = vrot.slane %v966, 1
      %v1062 = vrot.slane %v882, 1
      %v1063 = vsel %vm1025, %v1061, %v1062
      %v1064 = vrot.slane %v983, 1
      %v1065 = vsel %vm1025, %v1062, %v1064
      %v1066 = vrot.slane %v967, 1
      %v1067 = vrot.slane %v885, 1
      %v1068 = vsel %vm1025, %v1066, %v1067
      %v1069 = vrot.slane %v984, 1
      %v1070 = vsel %vm1025, %v1067, %v1069
      %v1071 = vrot.slane %v968, 1
      %v1072 = vrot.slane %v888, 1
      %v1073 = vsel %vm1025, %v1071, %v1072
      %v1074 = vrot.slane %v985, 1
      %v1075 = vsel %vm1025, %v1072, %v1074
      %v1076 = vrot.slane %v969, 1
      %v1077 = vrot.slane %v891, 1
      %v1078 = vsel %vm1025, %v1076, %v1077
      %v1079 = vrot.slane %v986, 1
      %v1080 = vsel %vm1025, %v1077, %v1079
      %v1081 = vrot.slane %v970, 1
      %v1082 = vrot.slane %v894, 1
      %v1083 = vsel %vm1025, %v1081, %v1082
      %v1084 = vrot.slane %v987, 1
      %v1085 = vsel %vm1025, %v1082, %v1084
      %v1086 = vrot.slane %v971, 1
      %v1087 = vrot.slane %v897, 1
      %v1088 = vsel %vm1025, %v1086, %v1087
      %v1089 = vrot.slane %v988, 1
      %v1090 = vsel %vm1025, %v1087, %v1089
      %v1091 = vrot.slane %v972, 1
      %v1092 = vrot.slane %v900, 1
      %v1093 = vsel %vm1025, %v1091, %v1092
      %v1094 = vrot.slane %v989, 1
      %v1095 = vsel %vm1025, %v1092, %v1094
      %v1096 = vrot.slane %v973, 1
      %v1097 = vrot.slane %v903, 1
      %v1098 = vsel %vm1025, %v1096, %v1097
      %v1099 = vrot.slane %v990, 1
      %v1100 = vsel %vm1025, %v1097, %v1099
      %v1101 = vrot.slane %v974, 1
      %v1102 = vrot.slane %v906, 1
      %v1103 = vsel %vm1025, %v1101, %v1102
      %v1104 = vrot.slane %v991, 1
      %v1105 = vsel %vm1025, %v1102, %v1104
      %1106 = vrot.lane.b32.xlu0 %v1028, 4
      %v1107 = vpop.permute.xlu0 %1106
      %1108 = vrot.lane.b32.xlu0 %v1030, 4
      %v1109 = vpop.permute.xlu0 %1108
      %1110 = vrot.lane.b32.xlu0 %v1033, 4
      %v1111 = vpop.permute.xlu0 %1110
      %1112 = vrot.lane.b32.xlu0 %v1035, 4
      %v1113 = vpop.permute.xlu0 %1112
      %1114 = vrot.lane.b32.xlu0 %v1038, 4
      %v1115 = vpop.permute.xlu0 %1114
      %1116 = vrot.lane.b32.xlu0 %v1040, 4
      %v1117 = vpop.permute.xlu0 %1116
      %1118 = vrot.lane.b32.xlu0 %v1043, 4
      %v1119 = vpop.permute.xlu0 %1118
      %1120 = vrot.lane.b32.xlu0 %v1045, 4
      %v1121 = vpop.permute.xlu0 %1120
      %1122 = vrot.lane.b32.xlu0 %v1048, 4
      %v1123 = vpop.permute.xlu0 %1122
      %1124 = vrot.lane.b32.xlu0 %v1050, 4
      %v1125 = vpop.permute.xlu0 %1124
      %1126 = vrot.lane.b32.xlu0 %v1053, 4
      %v1127 = vpop.permute.xlu0 %1126
      %1128 = vrot.lane.b32.xlu0 %v1055, 4
      %v1129 = vpop.permute.xlu0 %1128
      %1130 = vrot.lane.b32.xlu0 %v1058, 4
      %v1131 = vpop.permute.xlu0 %1130
      %1132 = vrot.lane.b32.xlu0 %v1060, 4
      %v1133 = vpop.permute.xlu0 %1132
      %1134 = vrot.lane.b32.xlu0 %v1063, 4
      %v1135 = vpop.permute.xlu0 %1134
      %1136 = vrot.lane.b32.xlu0 %v1065, 4
      %v1137 = vpop.permute.xlu0 %1136
      %1138 = vrot.lane.b32.xlu0 %v1068, 4
      %v1139 = vpop.permute.xlu0 %1138
      %1140 = vrot.lane.b32.xlu0 %v1070, 4
      %v1141 = vpop.permute.xlu0 %1140
      %1142 = vrot.lane.b32.xlu0 %v1073, 4
      %v1143 = vpop.permute.xlu0 %1142
      %1144 = vrot.lane.b32.xlu0 %v1075, 4
      %v1145 = vpop.permute.xlu0 %1144
      %1146 = vrot.lane.b32.xlu0 %v1078, 4
      %v1147 = vpop.permute.xlu0 %1146
      %1148 = vrot.lane.b32.xlu0 %v1080, 4
      %v1149 = vpop.permute.xlu0 %1148
      %1150 = vrot.lane.b32.xlu0 %v1083, 4
      %v1151 = vpop.permute.xlu0 %1150
      %1152 = vrot.lane.b32.xlu0 %v1085, 4
      %v1153 = vpop.permute.xlu0 %1152
      %1154 = vrot.lane.b32.xlu0 %v1088, 4
      %v1155 = vpop.permute.xlu0 %1154
      %1156 = vrot.lane.b32.xlu0 %v1090, 4
      %v1157 = vpop.permute.xlu0 %1156
      %1158 = vrot.lane.b32.xlu0 %v1093, 4
      %v1159 = vpop.permute.xlu0 %1158
      %1160 = vrot.lane.b32.xlu0 %v1095, 4
      %v1161 = vpop.permute.xlu0 %1160
      %1162 = vrot.lane.b32.xlu0 %v1098, 4
      %v1163 = vpop.permute.xlu0 %1162
      %1164 = vrot.lane.b32.xlu0 %v1100, 4
      %v1165 = vpop.permute.xlu0 %1164
      %1166 = vrot.lane.b32.xlu0 %v1103, 4
      %v1167 = vpop.permute.xlu0 %1166
      %1168 = vrot.lane.b32.xlu0 %v1105, 4
      %v1169 = vpop.permute.xlu0 %1168
      %vm1202 = vcmask 1045504
      %v1203 = vrot.slane %v959, 2
      %v1204 = vrot.slane %v861, 2
      %v1205 = vsel %vm1202, %v1203, %v1204
      %v1206 = vrot.slane %v976, 2
      %v1207 = vsel %vm1202, %v1204, %v1206
      %v1208 = vrot.slane %v960, 2
      %v1209 = vrot.slane %v864, 2
      %v1210 = vsel %vm1202, %v1208, %v1209
      %v1211 = vrot.slane %v977, 2
      %v1212 = vsel %vm1202, %v1209, %v1211
      %v1213 = vrot.slane %v961, 2
      %v1214 = vrot.slane %v867, 2
      %v1215 = vsel %vm1202, %v1213, %v1214
      %v1216 = vrot.slane %v978, 2
      %v1217 = vsel %vm1202, %v1214, %v1216
      %v1218 = vrot.slane %v962, 2
      %v1219 = vrot.slane %v870, 2
      %v1220 = vsel %vm1202, %v1218, %v1219
      %v1221 = vrot.slane %v979, 2
      %v1222 = vsel %vm1202, %v1219, %v1221
      %v1223 = vrot.slane %v963, 2
      %v1224 = vrot.slane %v873, 2
      %v1225 = vsel %vm1202, %v1223, %v1224
      %v1226 = vrot.slane %v980, 2
      %v1227 = vsel %vm1202, %v1224, %v1226
      %v1228 = vrot.slane %v964, 2
      %v1229 = vrot.slane %v876, 2
      %v1230 = vsel %vm1202, %v1228, %v1229
      %v1231 = vrot.slane %v981, 2
      %v1232 = vsel %vm1202, %v1229, %v1231
      %v1233 = vrot.slane %v965, 2
      %v1234 = vrot.slane %v879, 2
      %v1235 = vsel %vm1202, %v1233, %v1234
      %v1236 = vrot.slane %v982, 2
      %v1237 = vsel %vm1202, %v1234, %v1236
      %v1238 = vrot.slane %v966, 2
      %v1239 = vrot.slane %v882, 2
      %v1240 = vsel %vm1202, %v1238, %v1239
      %v1241 = vrot.slane %v983, 2
      %v1242 = vsel %vm1202, %v1239, %v1241
      %v1243 = vrot.slane %v967, 2
      %v1244 = vrot.slane %v885, 2
      %v1245 = vsel %vm1202, %v1243, %v1244
      %v1246 = vrot.slane %v984, 2
      %v1247 = vsel %vm1202, %v1244, %v1246
      %v1248 = vrot.slane %v968, 2
      %v1249 = vrot.slane %v888, 2
      %v1250 = vsel %vm1202, %v1248, %v1249
      %v1251 = vrot.slane %v985, 2
      %v1252 = vsel %vm1202, %v1249, %v1251
      %v1253 = vrot.slane %v969, 2
      %v1254 = vrot.slane %v891, 2
      %v1255 = vsel %vm1202, %v1253, %v1254
      %v1256 = vrot.slane %v986, 2
      %v1257 = vsel %vm1202, %v1254, %v1256
      %v1258 = vrot.slane %v970, 2
      %v1259 = vrot.slane %v894, 2
      %v1260 = vsel %vm1202, %v1258, %v1259
      %v1261 = vrot.slane %v987, 2
      %v1262 = vsel %vm1202, %v1259, %v1261
      %v1263 = vrot.slane %v971, 2
      %v1264 = vrot.slane %v897, 2
      %v1265 = vsel %vm1202, %v1263, %v1264
      %v1266 = vrot.slane %v988, 2
      %v1267 = vsel %vm1202, %v1264, %v1266
      %v1268 = vrot.slane %v972, 2
      %v1269 = vrot.slane %v900, 2
      %v1270 = vsel %vm1202, %v1268, %v1269
      %v1271 = vrot.slane %v989, 2
      %v1272 = vsel %vm1202, %v1269, %v1271
      %v1273 = vrot.slane %v973, 2
      %v1274 = vrot.slane %v903, 2
      %v1275 = vsel %vm1202, %v1273, %v1274
      %v1276 = vrot.slane %v990, 2
      %v1277 = vsel %vm1202, %v1274, %v1276
      %v1278 = vrot.slane %v974, 2
      %v1279 = vrot.slane %v906, 2
      %v1280 = vsel %vm1202, %v1278, %v1279
      %v1281 = vrot.slane %v991, 2
      %v1282 = vsel %vm1202, %v1279, %v1281
      %1283 = vrot.lane.b32.xlu0 %v1205, 8
      %v1284 = vpop.permute.xlu0 %1283
      %1285 = vrot.lane.b32.xlu0 %v1207, 8
      %v1286 = vpop.permute.xlu0 %1285
      %1287 = vrot.lane.b32.xlu0 %v1210, 8
      %v1288 = vpop.permute.xlu0 %1287
      %1289 = vrot.lane.b32.xlu0 %v1212, 8
      %v1290 = vpop.permute.xlu0 %1289
      %1291 = vrot.lane.b32.xlu0 %v1215, 8
      %v1292 = vpop.permute.xlu0 %1291
      %1293 = vrot.lane.b32.xlu0 %v1217, 8
      %v1294 = vpop.permute.xlu0 %1293
      %1295 = vrot.lane.b32.xlu0 %v1220, 8
      %v1296 = vpop.permute.xlu0 %1295
      %1297 = vrot.lane.b32.xlu0 %v1222, 8
      %v1298 = vpop.permute.xlu0 %1297
      %1299 = vrot.lane.b32.xlu0 %v1225, 8
      %v1300 = vpop.permute.xlu0 %1299
      %1301 = vrot.lane.b32.xlu0 %v1227, 8
      %v1302 = vpop.permute.xlu0 %1301
      %1303 = vrot.lane.b32.xlu0 %v1230, 8
      %v1304 = vpop.permute.xlu0 %1303
      %1305 = vrot.lane.b32.xlu0 %v1232, 8
      %v1306 = vpop.permute.xlu0 %1305
      %1307 = vrot.lane.b32.xlu0 %v1235, 8
      %v1308 = vpop.permute.xlu0 %1307
      %1309 = vrot.lane.b32.xlu0 %v1237, 8
      %v1310 = vpop.permute.xlu0 %1309
      %1311 = vrot.lane.b32.xlu0 %v1240, 8
      %v1312 = vpop.permute.xlu0 %1311
      %1313 = vrot.lane.b32.xlu0 %v1242, 8
      %v1314 = vpop.permute.xlu0 %1313
      %1315 = vrot.lane.b32.xlu0 %v1245, 8
      %v1316 = vpop.permute.xlu0 %1315
      %1317 = vrot.lane.b32.xlu0 %v1247, 8
      %v1318 = vpop.permute.xlu0 %1317
      %1319 = vrot.lane.b32.xlu0 %v1250, 8
      %v1320 = vpop.permute.xlu0 %1319
      %1321 = vrot.lane.b32.xlu0 %v1252, 8
      %v1322 = vpop.permute.xlu0 %1321
      %1323 = vrot.lane.b32.xlu0 %v1255, 8
      %v1324 = vpop.permute.xlu0 %1323
      %1325 = vrot.lane.b32.xlu0 %v1257, 8
      %v1326 = vpop.permute.xlu0 %1325
      %1327 = vrot.lane.b32.xlu0 %v1260, 8
      %v1328 = vpop.permute.xlu0 %1327
      %1329 = vrot.lane.b32.xlu0 %v1262, 8
      %v1330 = vpop.permute.xlu0 %1329
      %1331 = vrot.lane.b32.xlu0 %v1265, 8
      %v1332 = vpop.permute.xlu0 %1331
      %1333 = vrot.lane.b32.xlu0 %v1267, 8
      %v1334 = vpop.permute.xlu0 %1333
      %1335 = vrot.lane.b32.xlu0 %v1270, 8
      %v1336 = vpop.permute.xlu0 %1335
      %1337 = vrot.lane.b32.xlu0 %v1272, 8
      %v1338 = vpop.permute.xlu0 %1337
      %1339 = vrot.lane.b32.xlu0 %v1275, 8
      %v1340 = vpop.permute.xlu0 %1339
      %1341 = vrot.lane.b32.xlu0 %v1277, 8
      %v1342 = vpop.permute.xlu0 %1341
      %1343 = vrot.lane.b32.xlu0 %v1280, 8
      %v1344 = vpop.permute.xlu0 %1343
      %1345 = vrot.lane.b32.xlu0 %v1282, 8
      %v1346 = vpop.permute.xlu0 %1345
      %1380 = vrot.lane.b32.xlu0 %v960, 12
      %v1381 = vpop.permute.xlu0 %1380
      %1382 = vrot.lane.b32.xlu0 %v864, 12
      %v1383 = vpop.permute.xlu0 %1382
      %1384 = vrot.lane.b32.xlu0 %v961, 12
      %v1385 = vpop.permute.xlu0 %1384
      %1386 = vrot.lane.b32.xlu0 %v867, 12
      %v1387 = vpop.permute.xlu0 %1386
      %1388 = vrot.lane.b32.xlu0 %v962, 12
      %v1389 = vpop.permute.xlu0 %1388
      %1390 = vrot.lane.b32.xlu0 %v870, 12
      %v1391 = vpop.permute.xlu0 %1390
      %1392 = vrot.lane.b32.xlu0 %v963, 12
      %v1393 = vpop.permute.xlu0 %1392
      %1394 = vrot.lane.b32.xlu0 %v873, 12
      %v1395 = vpop.permute.xlu0 %1394
      %1396 = vrot.lane.b32.xlu0 %v964, 12
      %v1397 = vpop.permute.xlu0 %1396
      %1398 = vrot.lane.b32.xlu0 %v876, 12
      %v1399 = vpop.permute.xlu0 %1398
      %1400 = vrot.lane.b32.xlu0 %v965, 12
      %v1401 = vpop.permute.xlu0 %1400
      %1402 = vrot.lane.b32.xlu0 %v879, 12
      %v1403 = vpop.permute.xlu0 %1402
      %1404 = vrot.lane.b32.xlu0 %v966, 12
      %v1405 = vpop.permute.xlu0 %1404
      %1406 = vrot.lane.b32.xlu0 %v882, 12
      %v1407 = vpop.permute.xlu0 %1406
      %1408 = vrot.lane.b32.xlu0 %v967, 12
      %v1409 = vpop.permute.xlu0 %1408
      %1410 = vrot.lane.b32.xlu0 %v885, 12
      %v1411 = vpop.permute.xlu0 %1410
      %1412 = vrot.lane.b32.xlu0 %v968, 12
      %v1413 = vpop.permute.xlu0 %1412
      %1414 = vrot.lane.b32.xlu0 %v888, 12
      %v1415 = vpop.permute.xlu0 %1414
      %1416 = vrot.lane.b32.xlu0 %v969, 12
      %v1417 = vpop.permute.xlu0 %1416
      %1418 = vrot.lane.b32.xlu0 %v891, 12
      %v1419 = vpop.permute.xlu0 %1418
      %1420 = vrot.lane.b32.xlu0 %v970, 12
      %v1421 = vpop.permute.xlu0 %1420
      %1422 = vrot.lane.b32.xlu0 %v894, 12
      %v1423 = vpop.permute.xlu0 %1422
      %1424 = vrot.lane.b32.xlu0 %v971, 12
      %v1425 = vpop.permute.xlu0 %1424
      %1426 = vrot.lane.b32.xlu0 %v897, 12
      %v1427 = vpop.permute.xlu0 %1426
      %1428 = vrot.lane.b32.xlu0 %v972, 12
      %v1429 = vpop.permute.xlu0 %1428
      %1430 = vrot.lane.b32.xlu0 %v900, 12
      %v1431 = vpop.permute.xlu0 %1430
      %1432 = vrot.lane.b32.xlu0 %v973, 12
      %v1433 = vpop.permute.xlu0 %1432
      %1434 = vrot.lane.b32.xlu0 %v903, 12
      %v1435 = vpop.permute.xlu0 %1434
      %1436 = vrot.lane.b32.xlu0 %v974, 12
      %v1437 = vpop.permute.xlu0 %1436
      %1438 = vrot.lane.b32.xlu0 %v906, 12
      %v1439 = vpop.permute.xlu0 %1438
      %1440 = vrot.lane.b32.xlu0 %v975, 12
      %v1441 = vpop.permute.xlu0 %1440
      %1442 = vrot.lane.b32.xlu0 %v909, 12
      %v1443 = vpop.permute.xlu0 %1442
      %v1477 = vrot.slane %v975, 1
      %v1478 = vrot.slane %v909, 1
      %v1479 = vsel %vm1025, %v1477, %v1478
      %v1480 = vrot.slane %v992, 1
      %v1481 = vsel %vm1025, %v1478, %v1480
      %1482 = vrot.lane.b32.xlu0 %v1033, 16
      %v1483 = vpop.permute.xlu0 %1482
      %1484 = vrot.lane.b32.xlu0 %v1035, 16
      %v1485 = vpop.permute.xlu0 %1484
      %1486 = vrot.lane.b32.xlu0 %v1038, 16
      %v1487 = vpop.permute.xlu0 %1486
      %1488 = vrot.lane.b32.xlu0 %v1040, 16
      %v1489 = vpop.permute.xlu0 %1488
      %1490 = vrot.lane.b32.xlu0 %v1043, 16
      %v1491 = vpop.permute.xlu0 %1490
      %1492 = vrot.lane.b32.xlu0 %v1045, 16
      %v1493 = vpop.permute.xlu0 %1492
      %1494 = vrot.lane.b32.xlu0 %v1048, 16
      %v1495 = vpop.permute.xlu0 %1494
      %1496 = vrot.lane.b32.xlu0 %v1050, 16
      %v1497 = vpop.permute.xlu0 %1496
      %1498 = vrot.lane.b32.xlu0 %v1053, 16
      %v1499 = vpop.permute.xlu0 %1498
      %1500 = vrot.lane.b32.xlu0 %v1055, 16
      %v1501 = vpop.permute.xlu0 %1500
      %1502 = vrot.lane.b32.xlu0 %v1058, 16
      %v1503 = vpop.permute.xlu0 %1502
      %1504 = vrot.lane.b32.xlu0 %v1060, 16
      %v1505 = vpop.permute.xlu0 %1504
      %1506 = vrot.lane.b32.xlu0 %v1063, 16
      %v1507 = vpop.permute.xlu0 %1506
      %1508 = vrot.lane.b32.xlu0 %v1065, 16
      %v1509 = vpop.permute.xlu0 %1508
      %1510 = vrot.lane.b32.xlu0 %v1068, 16
      %v1511 = vpop.permute.xlu0 %1510
      %1512 = vrot.lane.b32.xlu0 %v1070, 16
      %v1513 = vpop.permute.xlu0 %1512
      %1514 = vrot.lane.b32.xlu0 %v1073, 16
      %v1515 = vpop.permute.xlu0 %1514
      %1516 = vrot.lane.b32.xlu0 %v1075, 16
      %v1517 = vpop.permute.xlu0 %1516
      %1518 = vrot.lane.b32.xlu0 %v1078, 16
      %v1519 = vpop.permute.xlu0 %1518
      %1520 = vrot.lane.b32.xlu0 %v1080, 16
      %v1521 = vpop.permute.xlu0 %1520
      %1522 = vrot.lane.b32.xlu0 %v1083, 16
      %v1523 = vpop.permute.xlu0 %1522
      %1524 = vrot.lane.b32.xlu0 %v1085, 16
      %v1525 = vpop.permute.xlu0 %1524
      %1526 = vrot.lane.b32.xlu0 %v1088, 16
      %v1527 = vpop.permute.xlu0 %1526
      %1528 = vrot.lane.b32.xlu0 %v1090, 16
      %v1529 = vpop.permute.xlu0 %1528
      %1530 = vrot.lane.b32.xlu0 %v1093, 16
      %v1531 = vpop.permute.xlu0 %1530
      %1532 = vrot.lane.b32.xlu0 %v1095, 16
      %v1533 = vpop.permute.xlu0 %1532
      %1534 = vrot.lane.b32.xlu0 %v1098, 16
      %v1535 = vpop.permute.xlu0 %1534
      %1536 = vrot.lane.b32.xlu0 %v1100, 16
      %v1537 = vpop.permute.xlu0 %1536
      %1538 = vrot.lane.b32.xlu0 %v1103, 16
      %v1539 = vpop.permute.xlu0 %1538
      %1540 = vrot.lane.b32.xlu0 %v1105, 16
      %v1541 = vpop.permute.xlu0 %1540
      %1542 = vrot.lane.b32.xlu0 %v1479, 16
      %v1543 = vpop.permute.xlu0 %1542
      %1544 = vrot.lane.b32.xlu0 %v1481, 16
      %v1545 = vpop.permute.xlu0 %1544
      %v1578 = vrot.slane %v975, 2
      %v1579 = vrot.slane %v909, 2
      %v1580 = vsel %vm1202, %v1578, %v1579
      %v1581 = vrot.slane %v992, 2
      %v1582 = vsel %vm1202, %v1579, %v1581
      %1583 = vrot.lane.b32.xlu0 %v1210, 20
      %v1584 = vpop.permute.xlu0 %1583
      %1585 = vrot.lane.b32.xlu0 %v1212, 20
      %v1586 = vpop.permute.xlu0 %1585
      %1587 = vrot.lane.b32.xlu0 %v1215, 20
      %v1588 = vpop.permute.xlu0 %1587
      %1589 = vrot.lane.b32.xlu0 %v1217, 20
      %v1590 = vpop.permute.xlu0 %1589
      %1591 = vrot.lane.b32.xlu0 %v1220, 20
      %v1592 = vpop.permute.xlu0 %1591
      %1593 = vrot.lane.b32.xlu0 %v1222, 20
      %v1594 = vpop.permute.xlu0 %1593
      %1595 = vrot.lane.b32.xlu0 %v1225, 20
      %v1596 = vpop.permute.xlu0 %1595
      %1597 = vrot.lane.b32.xlu0 %v1227, 20
      %v1598 = vpop.permute.xlu0 %1597
      %1599 = vrot.lane.b32.xlu0 %v1230, 20
      %v1600 = vpop.permute.xlu0 %1599
      %1601 = vrot.lane.b32.xlu0 %v1232, 20
      %v1602 = vpop.permute.xlu0 %1601
      %1603 = vrot.lane.b32.xlu0 %v1235, 20
      %v1604 = vpop.permute.xlu0 %1603
      %1605 = vrot.lane.b32.xlu0 %v1237, 20
      %v1606 = vpop.permute.xlu0 %1605
      %1607 = vrot.lane.b32.xlu0 %v1240, 20
      %v1608 = vpop.permute.xlu0 %1607
      %1609 = vrot.lane.b32.xlu0 %v1242, 20
      %v1610 = vpop.permute.xlu0 %1609
      %1611 = vrot.lane.b32.xlu0 %v1245, 20
      %v1612 = vpop.permute.xlu0 %1611
      %1613 = vrot.lane.b32.xlu0 %v1247, 20
      %v1614 = vpop.permute.xlu0 %1613
      %1615 = vrot.lane.b32.xlu0 %v1250, 20
      %v1616 = vpop.permute.xlu0 %1615
      %1617 = vrot.lane.b32.xlu0 %v1252, 20
      %v1618 = vpop.permute.xlu0 %1617
      %1619 = vrot.lane.b32.xlu0 %v1255, 20
      %v1620 = vpop.permute.xlu0 %1619
      %1621 = vrot.lane.b32.xlu0 %v1257, 20
      %v1622 = vpop.permute.xlu0 %1621
      %1623 = vrot.lane.b32.xlu0 %v1260, 20
      %v1624 = vpop.permute.xlu0 %1623
      %1625 = vrot.lane.b32.xlu0 %v1262, 20
      %v1626 = vpop.permute.xlu0 %1625
      %1627 = vrot.lane.b32.xlu0 %v1265, 20
      %v1628 = vpop.permute.xlu0 %1627
      %1629 = vrot.lane.b32.xlu0 %v1267, 20
      %v1630 = vpop.permute.xlu0 %1629
      %1631 = vrot.lane.b32.xlu0 %v1270, 20
      %v1632 = vpop.permute.xlu0 %1631
      %1633 = vrot.lane.b32.xlu0 %v1272, 20
      %v1634 = vpop.permute.xlu0 %1633
      %1635 = vrot.lane.b32.xlu0 %v1275, 20
      %v1636 = vpop.permute.xlu0 %1635
      %1637 = vrot.lane.b32.xlu0 %v1277, 20
      %v1638 = vpop.permute.xlu0 %1637
      %1639 = vrot.lane.b32.xlu0 %v1280, 20
      %v1640 = vpop.permute.xlu0 %1639
      %1641 = vrot.lane.b32.xlu0 %v1282, 20
      %v1642 = vpop.permute.xlu0 %1641
      %1643 = vrot.lane.b32.xlu0 %v1580, 20
      %v1644 = vpop.permute.xlu0 %1643
      %1645 = vrot.lane.b32.xlu0 %v1582, 20
      %v1646 = vpop.permute.xlu0 %1645
      %1679 = vrot.lane.b32.xlu0 %v961, 24
      %v1680 = vpop.permute.xlu0 %1679
      %1681 = vrot.lane.b32.xlu0 %v867, 24
      %v1682 = vpop.permute.xlu0 %1681
      %1683 = vrot.lane.b32.xlu0 %v962, 24
      %v1684 = vpop.permute.xlu0 %1683
      %1685 = vrot.lane.b32.xlu0 %v870, 24
      %v1686 = vpop.permute.xlu0 %1685
      %1687 = vrot.lane.b32.xlu0 %v963, 24
      %v1688 = vpop.permute.xlu0 %1687
      %1689 = vrot.lane.b32.xlu0 %v873, 24
      %v1690 = vpop.permute.xlu0 %1689
      %1691 = vrot.lane.b32.xlu0 %v964, 24
      %v1692 = vpop.permute.xlu0 %1691
      %1693 = vrot.lane.b32.xlu0 %v876, 24
      %v1694 = vpop.permute.xlu0 %1693
      %1695 = vrot.lane.b32.xlu0 %v965, 24
      %v1696 = vpop.permute.xlu0 %1695
      %1697 = vrot.lane.b32.xlu0 %v879, 24
      %v1698 = vpop.permute.xlu0 %1697
      %1699 = vrot.lane.b32.xlu0 %v966, 24
      %v1700 = vpop.permute.xlu0 %1699
      %1701 = vrot.lane.b32.xlu0 %v882, 24
      %v1702 = vpop.permute.xlu0 %1701
      %1703 = vrot.lane.b32.xlu0 %v967, 24
      %v1704 = vpop.permute.xlu0 %1703
      %1705 = vrot.lane.b32.xlu0 %v885, 24
      %v1706 = vpop.permute.xlu0 %1705
      %1707 = vrot.lane.b32.xlu0 %v968, 24
      %v1708 = vpop.permute.xlu0 %1707
      %1709 = vrot.lane.b32.xlu0 %v888, 24
      %v1710 = vpop.permute.xlu0 %1709
      %1711 = vrot.lane.b32.xlu0 %v969, 24
      %v1712 = vpop.permute.xlu0 %1711
      %1713 = vrot.lane.b32.xlu0 %v891, 24
      %v1714 = vpop.permute.xlu0 %1713
      %1715 = vrot.lane.b32.xlu0 %v970, 24
      %v1716 = vpop.permute.xlu0 %1715
      %1717 = vrot.lane.b32.xlu0 %v894, 24
      %v1718 = vpop.permute.xlu0 %1717
      %1719 = vrot.lane.b32.xlu0 %v971, 24
      %v1720 = vpop.permute.xlu0 %1719
      %1721 = vrot.lane.b32.xlu0 %v897, 24
      %v1722 = vpop.permute.xlu0 %1721
      %1723 = vrot.lane.b32.xlu0 %v972, 24
      %v1724 = vpop.permute.xlu0 %1723
      %1725 = vrot.lane.b32.xlu0 %v900, 24
      %v1726 = vpop.permute.xlu0 %1725
      %1727 = vrot.lane.b32.xlu0 %v973, 24
      %v1728 = vpop.permute.xlu0 %1727
      %1729 = vrot.lane.b32.xlu0 %v903, 24
      %v1730 = vpop.permute.xlu0 %1729
      %1731 = vrot.lane.b32.xlu0 %v974, 24
      %v1732 = vpop.permute.xlu0 %1731
      %1733 = vrot.lane.b32.xlu0 %v906, 24
      %v1734 = vpop.permute.xlu0 %1733
      %1735 = vrot.lane.b32.xlu0 %v975, 24
      %v1736 = vpop.permute.xlu0 %1735
      %1737 = vrot.lane.b32.xlu0 %v909, 24
      %v1738 = vpop.permute.xlu0 %1737
      %1739 = vrot.lane.b32.xlu0 %v959, 24
      %v1740 = vpop.permute.xlu0 %1739
      %1741 = vrot.lane.b32.xlu0 %v861, 24
      %v1742 = vpop.permute.xlu0 %1741
      %1775 = vrot.lane.b32.xlu0 %v1038, 28
      %v1776 = vpop.permute.xlu0 %1775
      %1777 = vrot.lane.b32.xlu0 %v1040, 28
      %v1778 = vpop.permute.xlu0 %1777
      %1779 = vrot.lane.b32.xlu0 %v1043, 28
      %v1780 = vpop.permute.xlu0 %1779
      %1781 = vrot.lane.b32.xlu0 %v1045, 28
      %v1782 = vpop.permute.xlu0 %1781
      %1783 = vrot.lane.b32.xlu0 %v1048, 28
      %v1784 = vpop.permute.xlu0 %1783
      %1785 = vrot.lane.b32.xlu0 %v1050, 28
      %v1786 = vpop.permute.xlu0 %1785
      %1787 = vrot.lane.b32.xlu0 %v1053, 28
      %v1788 = vpop.permute.xlu0 %1787
      %1789 = vrot.lane.b32.xlu0 %v1055, 28
      %v1790 = vpop.permute.xlu0 %1789
      %1791 = vrot.lane.b32.xlu0 %v1058, 28
      %v1792 = vpop.permute.xlu0 %1791
      %1793 = vrot.lane.b32.xlu0 %v1060, 28
      %v1794 = vpop.permute.xlu0 %1793
      %1795 = vrot.lane.b32.xlu0 %v1063, 28
      %v1796 = vpop.permute.xlu0 %1795
      %1797 = vrot.lane.b32.xlu0 %v1065, 28
      %v1798 = vpop.permute.xlu0 %1797
      %1799 = vrot.lane.b32.xlu0 %v1068, 28
      %v1800 = vpop.permute.xlu0 %1799
      %1801 = vrot.lane.b32.xlu0 %v1070, 28
      %v1802 = vpop.permute.xlu0 %1801
      %1803 = vrot.lane.b32.xlu0 %v1073, 28
      %v1804 = vpop.permute.xlu0 %1803
      %1805 = vrot.lane.b32.xlu0 %v1075, 28
      %v1806 = vpop.permute.xlu0 %1805
      %1807 = vrot.lane.b32.xlu0 %v1078, 28
      %v1808 = vpop.permute.xlu0 %1807
      %1809 = vrot.lane.b32.xlu0 %v1080, 28
      %v1810 = vpop.permute.xlu0 %1809
      %1811 = vrot.lane.b32.xlu0 %v1083, 28
      %v1812 = vpop.permute.xlu0 %1811
      %1813 = vrot.lane.b32.xlu0 %v1085, 28
      %v1814 = vpop.permute.xlu0 %1813
      %1815 = vrot.lane.b32.xlu0 %v1088, 28
      %v1816 = vpop.permute.xlu0 %1815
      %1817 = vrot.lane.b32.xlu0 %v1090, 28
      %v1818 = vpop.permute.xlu0 %1817
      %1819 = vrot.lane.b32.xlu0 %v1093, 28
      %v1820 = vpop.permute.xlu0 %1819
      %1821 = vrot.lane.b32.xlu0 %v1095, 28
      %v1822 = vpop.permute.xlu0 %1821
      %1823 = vrot.lane.b32.xlu0 %v1098, 28
      %v1824 = vpop.permute.xlu0 %1823
      %1825 = vrot.lane.b32.xlu0 %v1100, 28
      %v1826 = vpop.permute.xlu0 %1825
      %1827 = vrot.lane.b32.xlu0 %v1103, 28
      %v1828 = vpop.permute.xlu0 %1827
      %1829 = vrot.lane.b32.xlu0 %v1105, 28
      %v1830 = vpop.permute.xlu0 %1829
      %1831 = vrot.lane.b32.xlu0 %v1479, 28
      %v1832 = vpop.permute.xlu0 %1831
      %1833 = vrot.lane.b32.xlu0 %v1481, 28
      %v1834 = vpop.permute.xlu0 %1833
      %1835 = vrot.lane.b32.xlu0 %v1028, 28
      %v1836 = vpop.permute.xlu0 %1835
      %1837 = vrot.lane.b32.xlu0 %v1030, 28
      %v1838 = vpop.permute.xlu0 %1837
      %1871 = vrot.lane.b32.xlu0 %v1215, 32
      %v1872 = vpop.permute.xlu0 %1871
      %1873 = vrot.lane.b32.xlu0 %v1217, 32
      %v1874 = vpop.permute.xlu0 %1873
      %1875 = vrot.lane.b32.xlu0 %v1220, 32
      %v1876 = vpop.permute.xlu0 %1875
      %1877 = vrot.lane.b32.xlu0 %v1222, 32
      %v1878 = vpop.permute.xlu0 %1877
      %1879 = vrot.lane.b32.xlu0 %v1225, 32
      %v1880 = vpop.permute.xlu0 %1879
      %1881 = vrot.lane.b32.xlu0 %v1227, 32
      %v1882 = vpop.permute.xlu0 %1881
      %1883 = vrot.lane.b32.xlu0 %v1230, 32
      %v1884 = vpop.permute.xlu0 %1883
      %1885 = vrot.lane.b32.xlu0 %v1232, 32
      %v1886 = vpop.permute.xlu0 %1885
      %1887 = vrot.lane.b32.xlu0 %v1235, 32
      %v1888 = vpop.permute.xlu0 %1887
      %1889 = vrot.lane.b32.xlu0 %v1237, 32
      %v1890 = vpop.permute.xlu0 %1889
      %1891 = vrot.lane.b32.xlu0 %v1240, 32
      %v1892 = vpop.permute.xlu0 %1891
      %1893 = vrot.lane.b32.xlu0 %v1242, 32
      %v1894 = vpop.permute.xlu0 %1893
      %1895 = vrot.lane.b32.xlu0 %v1245, 32
      %v1896 = vpop.permute.xlu0 %1895
      %1897 = vrot.lane.b32.xlu0 %v1247, 32
      %v1898 = vpop.permute.xlu0 %1897
      %1899 = vrot.lane.b32.xlu0 %v1250, 32
      %v1900 = vpop.permute.xlu0 %1899
      %1901 = vrot.lane.b32.xlu0 %v1252, 32
      %v1902 = vpop.permute.xlu0 %1901
      %1903 = vrot.lane.b32.xlu0 %v1255, 32
      %v1904 = vpop.permute.xlu0 %1903
      %1905 = vrot.lane.b32.xlu0 %v1257, 32
      %v1906 = vpop.permute.xlu0 %1905
      %1907 = vrot.lane.b32.xlu0 %v1260, 32
      %v1908 = vpop.permute.xlu0 %1907
      %1909 = vrot.lane.b32.xlu0 %v1262, 32
      %v1910 = vpop.permute.xlu0 %1909
      %1911 = vrot.lane.b32.xlu0 %v1265, 32
      %v1912 = vpop.permute.xlu0 %1911
      %1913 = vrot.lane.b32.xlu0 %v1267, 32
      %v1914 = vpop.permute.xlu0 %1913
      %1915 = vrot.lane.b32.xlu0 %v1270, 32
      %v1916 = vpop.permute.xlu0 %1915
      %1917 = vrot.lane.b32.xlu0 %v1272, 32
      %v1918 = vpop.permute.xlu0 %1917
      %1919 = vrot.lane.b32.xlu0 %v1275, 32
      %v1920 = vpop.permute.xlu0 %1919
      %1921 = vrot.lane.b32.xlu0 %v1277, 32
      %v1922 = vpop.permute.xlu0 %1921
      %1923 = vrot.lane.b32.xlu0 %v1280, 32
      %v1924 = vpop.permute.xlu0 %1923
      %1925 = vrot.lane.b32.xlu0 %v1282, 32
      %v1926 = vpop.permute.xlu0 %1925
      %1927 = vrot.lane.b32.xlu0 %v1580, 32
      %v1928 = vpop.permute.xlu0 %1927
      %1929 = vrot.lane.b32.xlu0 %v1582, 32
      %v1930 = vpop.permute.xlu0 %1929
      %1931 = vrot.lane.b32.xlu0 %v1205, 32
      %v1932 = vpop.permute.xlu0 %1931
      %1933 = vrot.lane.b32.xlu0 %v1207, 32
      %v1934 = vpop.permute.xlu0 %1933
      %vm1967 = vcmask 31744
      %v1968 = vsel %vm1967, %v959, %v1107
      %v1969 = vsel %vm1967, %v861, %v1109
      %v1970 = vsel %vm1967, %v960, %v1111
      %v1971 = vsel %vm1967, %v864, %v1113
      %v1972 = vsel %vm1967, %v961, %v1115
      %v1973 = vsel %vm1967, %v867, %v1117
      %v1974 = vsel %vm1967, %v962, %v1119
      %v1975 = vsel %vm1967, %v870, %v1121
      %v1976 = vsel %vm1967, %v963, %v1123
      %v1977 = vsel %vm1967, %v873, %v1125
      %v1978 = vsel %vm1967, %v964, %v1127
      %v1979 = vsel %vm1967, %v876, %v1129
      %v1980 = vsel %vm1967, %v965, %v1131
      %v1981 = vsel %vm1967, %v879, %v1133
      %v1982 = vsel %vm1967, %v966, %v1135
      %v1983 = vsel %vm1967, %v882, %v1137
      %v1984 = vsel %vm1967, %v967, %v1139
      %v1985 = vsel %vm1967, %v885, %v1141
      %v1986 = vsel %vm1967, %v968, %v1143
      %v1987 = vsel %vm1967, %v888, %v1145
      %v1988 = vsel %vm1967, %v969, %v1147
      %v1989 = vsel %vm1967, %v891, %v1149
      %v1990 = vsel %vm1967, %v970, %v1151
      %v1991 = vsel %vm1967, %v894, %v1153
      %v1992 = vsel %vm1967, %v971, %v1155
      %v1993 = vsel %vm1967, %v897, %v1157
      %v1994 = vsel %vm1967, %v972, %v1159
      %v1995 = vsel %vm1967, %v900, %v1161
      %v1996 = vsel %vm1967, %v973, %v1163
      %v1997 = vsel %vm1967, %v903, %v1165
      %v1998 = vsel %vm1967, %v974, %v1167
      %v1999 = vsel %vm1967, %v906, %v1169
      %vm2000 = vcmask 64512
      %v2001 = vsel %vm2000, %v1968, %v1284
      %v2002 = vsel %vm2000, %v1969, %v1286
      %v2003 = vsel %vm2000, %v1970, %v1288
      %v2004 = vsel %vm2000, %v1971, %v1290
      %v2005 = vsel %vm2000, %v1972, %v1292
      %v2006 = vsel %vm2000, %v1973, %v1294
      %v2007 = vsel %vm2000, %v1974, %v1296
      %v2008 = vsel %vm2000, %v1975, %v1298
      %v2009 = vsel %vm2000, %v1976, %v1300
      %v2010 = vsel %vm2000, %v1977, %v1302
      %v2011 = vsel %vm2000, %v1978, %v1304
      %v2012 = vsel %vm2000, %v1979, %v1306
      %v2013 = vsel %vm2000, %v1980, %v1308
      %v2014 = vsel %vm2000, %v1981, %v1310
      %v2015 = vsel %vm2000, %v1982, %v1312
      %v2016 = vsel %vm2000, %v1983, %v1314
      %v2017 = vsel %vm2000, %v1984, %v1316
      %v2018 = vsel %vm2000, %v1985, %v1318
      %v2019 = vsel %vm2000, %v1986, %v1320
      %v2020 = vsel %vm2000, %v1987, %v1322
      %v2021 = vsel %vm2000, %v1988, %v1324
      %v2022 = vsel %vm2000, %v1989, %v1326
      %v2023 = vsel %vm2000, %v1990, %v1328
      %v2024 = vsel %vm2000, %v1991, %v1330
      %v2025 = vsel %vm2000, %v1992, %v1332
      %v2026 = vsel %vm2000, %v1993, %v1334
      %v2027 = vsel %vm2000, %v1994, %v1336
      %v2028 = vsel %vm2000, %v1995, %v1338
      %v2029 = vsel %vm2000, %v1996, %v1340
      %v2030 = vsel %vm2000, %v1997, %v1342
      %v2031 = vsel %vm2000, %v1998, %v1344
      %v2032 = vsel %vm2000, %v1999, %v1346
      %vm2033 = vcmask 97280
      %v2034 = vsel %vm2033, %v2001, %v1381
      %v2035 = vsel %vm2033, %v2002, %v1383
      %v2036 = vsel %vm2033, %v2003, %v1385
      %v2037 = vsel %vm2033, %v2004, %v1387
      %v2038 = vsel %vm2033, %v2005, %v1389
      %v2039 = vsel %vm2033, %v2006, %v1391
      %v2040 = vsel %vm2033, %v2007, %v1393
      %v2041 = vsel %vm2033, %v2008, %v1395
      %v2042 = vsel %vm2033, %v2009, %v1397
      %v2043 = vsel %vm2033, %v2010, %v1399
      %v2044 = vsel %vm2033, %v2011, %v1401
      %v2045 = vsel %vm2033, %v2012, %v1403
      %v2046 = vsel %vm2033, %v2013, %v1405
      %v2047 = vsel %vm2033, %v2014, %v1407
      %v2048 = vsel %vm2033, %v2015, %v1409
      %v2049 = vsel %vm2033, %v2016, %v1411
      %v2050 = vsel %vm2033, %v2017, %v1413
      %v2051 = vsel %vm2033, %v2018, %v1415
      %v2052 = vsel %vm2033, %v2019, %v1417
      %v2053 = vsel %vm2033, %v2020, %v1419
      %v2054 = vsel %vm2033, %v2021, %v1421
      %v2055 = vsel %vm2033, %v2022, %v1423
      %v2056 = vsel %vm2033, %v2023, %v1425
      %v2057 = vsel %vm2033, %v2024, %v1427
      %v2058 = vsel %vm2033, %v2025, %v1429
      %v2059 = vsel %vm2033, %v2026, %v1431
      %v2060 = vsel %vm2033, %v2027, %v1433
      %v2061 = vsel %vm2033, %v2028, %v1435
      %v2062 = vsel %vm2033, %v2029, %v1437
      %v2063 = vsel %vm2033, %v2030, %v1439
      %v2064 = vsel %vm2033, %v2031, %v1441
      %v2065 = vsel %vm2033, %v2032, %v1443
      %v2066 = vsel %vm394, %v2034, %v1483
      %v2067 = vsel %vm394, %v2035, %v1485
      %v2068 = vsel %vm394, %v2036, %v1487
      %v2069 = vsel %vm394, %v2037, %v1489
      %v2070 = vsel %vm394, %v2038, %v1491
      %v2071 = vsel %vm394, %v2039, %v1493
      %v2072 = vsel %vm394, %v2040, %v1495
      %v2073 = vsel %vm394, %v2041, %v1497
      %v2074 = vsel %vm394, %v2042, %v1499
      %v2075 = vsel %vm394, %v2043, %v1501
      %v2076 = vsel %vm394, %v2044, %v1503
      %v2077 = vsel %vm394, %v2045, %v1505
      %v2078 = vsel %vm394, %v2046, %v1507
      %v2079 = vsel %vm394, %v2047, %v1509
      %v2080 = vsel %vm394, %v2048, %v1511
      %v2081 = vsel %vm394, %v2049, %v1513
      %v2082 = vsel %vm394, %v2050, %v1515
      %v2083 = vsel %vm394, %v2051, %v1517
      %v2084 = vsel %vm394, %v2052, %v1519
      %v2085 = vsel %vm394, %v2053, %v1521
      %v2086 = vsel %vm394, %v2054, %v1523
      %v2087 = vsel %vm394, %v2055, %v1525
      %v2088 = vsel %vm394, %v2056, %v1527
      %v2089 = vsel %vm394, %v2057, %v1529
      %v2090 = vsel %vm394, %v2058, %v1531
      %v2091 = vsel %vm394, %v2059, %v1533
      %v2092 = vsel %vm394, %v2060, %v1535
      %v2093 = vsel %vm394, %v2061, %v1537
      %v2094 = vsel %vm394, %v2062, %v1539
      %v2095 = vsel %vm394, %v2063, %v1541
      %v2096 = vsel %vm394, %v2064, %v1543
      %v2097 = vsel %vm394, %v2065, %v1545
      %vm2098 = vcmask 162816
      %v2099 = vsel %vm2098, %v2066, %v1584
      %v2100 = vsel %vm2098, %v2067, %v1586
      %v2101 = vsel %vm2098, %v2068, %v1588
      %v2102 = vsel %vm2098, %v2069, %v1590
      %v2103 = vsel %vm2098, %v2070, %v1592
      %v2104 = vsel %vm2098, %v2071, %v1594
      %v2105 = vsel %vm2098, %v2072, %v1596
      %v2106 = vsel %vm2098, %v2073, %v1598
      %v2107 = vsel %vm2098, %v2074, %v1600
      %v2108 = vsel %vm2098, %v2075, %v1602
      %v2109 = vsel %vm2098, %v2076, %v1604
      %v2110 = vsel %vm2098, %v2077, %v1606
      %v2111 = vsel %vm2098, %v2078, %v1608
      %v2112 = vsel %vm2098, %v2079, %v1610
      %v2113 = vsel %vm2098, %v2080, %v1612
      %v2114 = vsel %vm2098, %v2081, %v1614
      %v2115 = vsel %vm2098, %v2082, %v1616
      %v2116 = vsel %vm2098, %v2083, %v1618
      %v2117 = vsel %vm2098, %v2084, %v1620
      %v2118 = vsel %vm2098, %v2085, %v1622
      %v2119 = vsel %vm2098, %v2086, %v1624
      %v2120 = vsel %vm2098, %v2087, %v1626
      %v2121 = vsel %vm2098, %v2088, %v1628
      %v2122 = vsel %vm2098, %v2089, %v1630
      %v2123 = vsel %vm2098, %v2090, %v1632
      %v2124 = vsel %vm2098, %v2091, %v1634
      %v2125 = vsel %vm2098, %v2092, %v1636
      %v2126 = vsel %vm2098, %v2093, %v1638
      %v2127 = vsel %vm2098, %v2094, %v1640
      %v2128 = vsel %vm2098, %v2095, %v1642
      %v2129 = vsel %vm2098, %v2096, %v1644
      %v2130 = vsel %vm2098, %v2097, %v1646
      %vm2131 = vcmask 195584
      %v2132 = vsel %vm2131, %v2099, %v1680
      %v2133 = vsel %vm2131, %v2100, %v1682
      %v2134 = vsel %vm2131, %v2101, %v1684
      %v2135 = vsel %vm2131, %v2102, %v1686
      %v2136 = vsel %vm2131, %v2103, %v1688
      %v2137 = vsel %vm2131, %v2104, %v1690
      %v2138 = vsel %vm2131, %v2105, %v1692
      %v2139 = vsel %vm2131, %v2106, %v1694
      %v2140 = vsel %vm2131, %v2107, %v1696
      %v2141 = vsel %vm2131, %v2108, %v1698
      %v2142 = vsel %vm2131, %v2109, %v1700
      %v2143 = vsel %vm2131, %v2110, %v1702
      %v2144 = vsel %vm2131, %v2111, %v1704
      %v2145 = vsel %vm2131, %v2112, %v1706
      %v2146 = vsel %vm2131, %v2113, %v1708
      %v2147 = vsel %vm2131, %v2114, %v1710
      %v2148 = vsel %vm2131, %v2115, %v1712
      %v2149 = vsel %vm2131, %v2116, %v1714
      %v2150 = vsel %vm2131, %v2117, %v1716
      %v2151 = vsel %vm2131, %v2118, %v1718
      %v2152 = vsel %vm2131, %v2119, %v1720
      %v2153 = vsel %vm2131, %v2120, %v1722
      %v2154 = vsel %vm2131, %v2121, %v1724
      %v2155 = vsel %vm2131, %v2122, %v1726
      %v2156 = vsel %vm2131, %v2123, %v1728
      %v2157 = vsel %vm2131, %v2124, %v1730
      %v2158 = vsel %vm2131, %v2125, %v1732
      %v2159 = vsel %vm2131, %v2126, %v1734
      %v2160 = vsel %vm2131, %v2127, %v1736
      %v2161 = vsel %vm2131, %v2128, %v1738
      %v2162 = vsel %vm2131, %v2129, %v1740
      %v2163 = vsel %vm2131, %v2130, %v1742
      %vm2164 = vcmask 228352
      %v2165 = vsel %vm2164, %v2132, %v1776
      %v2166 = vsel %vm2164, %v2133, %v1778
      %v2167 = vsel %vm2164, %v2134, %v1780
      %v2168 = vsel %vm2164, %v2135, %v1782
      %v2169 = vsel %vm2164, %v2136, %v1784
      %v2170 = vsel %vm2164, %v2137, %v1786
      %v2171 = vsel %vm2164, %v2138, %v1788
      %v2172 = vsel %vm2164, %v2139, %v1790
      %v2173 = vsel %vm2164, %v2140, %v1792
      %v2174 = vsel %vm2164, %v2141, %v1794
      %v2175 = vsel %vm2164, %v2142, %v1796
      %v2176 = vsel %vm2164, %v2143, %v1798
      %v2177 = vsel %vm2164, %v2144, %v1800
      %v2178 = vsel %vm2164, %v2145, %v1802
      %v2179 = vsel %vm2164, %v2146, %v1804
      %v2180 = vsel %vm2164, %v2147, %v1806
      %v2181 = vsel %vm2164, %v2148, %v1808
      %v2182 = vsel %vm2164, %v2149, %v1810
      %v2183 = vsel %vm2164, %v2150, %v1812
      %v2184 = vsel %vm2164, %v2151, %v1814
      %v2185 = vsel %vm2164, %v2152, %v1816
      %v2186 = vsel %vm2164, %v2153, %v1818
      %v2187 = vsel %vm2164, %v2154, %v1820
      %v2188 = vsel %vm2164, %v2155, %v1822
      %v2189 = vsel %vm2164, %v2156, %v1824
      %v2190 = vsel %vm2164, %v2157, %v1826
      %v2191 = vsel %vm2164, %v2158, %v1828
      %v2192 = vsel %vm2164, %v2159, %v1830
      %v2193 = vsel %vm2164, %v2160, %v1832
      %v2194 = vsel %vm2164, %v2161, %v1834
      %v2195 = vsel %vm2164, %v2162, %v1836
      %v2196 = vsel %vm2164, %v2163, %v1838
      %vm2197 = vcmask 261120
      %v2198 = vsel %vm2197, %v2165, %v1872
      %v2199 = vsel %vm2197, %v2166, %v1874
      %v2200 = vsel %vm2197, %v2167, %v1876
      %v2201 = vsel %vm2197, %v2168, %v1878
      %v2202 = vsel %vm2197, %v2169, %v1880
      %v2203 = vsel %vm2197, %v2170, %v1882
      %v2204 = vsel %vm2197, %v2171, %v1884
      %v2205 = vsel %vm2197, %v2172, %v1886
      %v2206 = vsel %vm2197, %v2173, %v1888
      %v2207 = vsel %vm2197, %v2174, %v1890
      %v2208 = vsel %vm2197, %v2175, %v1892
      %v2209 = vsel %vm2197, %v2176, %v1894
      %v2210 = vsel %vm2197, %v2177, %v1896
      %v2211 = vsel %vm2197, %v2178, %v1898
      %v2212 = vsel %vm2197, %v2179, %v1900
      %v2213 = vsel %vm2197, %v2180, %v1902
      %v2214 = vsel %vm2197, %v2181, %v1904
      %v2215 = vsel %vm2197, %v2182, %v1906
      %v2216 = vsel %vm2197, %v2183, %v1908
      %v2217 = vsel %vm2197, %v2184, %v1910
      %v2218 = vsel %vm2197, %v2185, %v1912
      %v2219 = vsel %vm2197, %v2186, %v1914
      %v2220 = vsel %vm2197, %v2187, %v1916
      %v2221 = vsel %vm2197, %v2188, %v1918
      %v2222 = vsel %vm2197, %v2189, %v1920
      %v2223 = vsel %vm2197, %v2190, %v1922
      %v2224 = vsel %vm2197, %v2191, %v1924
      %v2225 = vsel %vm2197, %v2192, %v1926
      %v2226 = vsel %vm2197, %v2193, %v1928
      %v2227 = vsel %vm2197, %v2194, %v1930
      %v2228 = vsel %vm2197, %v2195, %v1932
      %v2229 = vsel %vm2197, %v2196, %v1934
      %v2230 = vld [vmem:[%s4] sm:$0xff]
      %v2231 = vld [vmem:[%s4 + $0x8] sm:$0xff]
      %v2232 = vld [vmem:[%s4 + $0x10] sm:$0xff]
      %v2233 = vld [vmem:[%s4 + $0x18] sm:$0xff]
      %v2234 = vld [vmem:[%s4 + $0x20] sm:$0xf]
      %vm2235 = vcmask 293888
      %v2237 = vsel %vm2235, %v2198, 0
      %v2240 = vsel %vm2235, %v2199, 0
      %v2243 = vsel %vm2235, %v2200, 0
      %v2246 = vsel %vm2235, %v2201, 0
      %v2249 = vsel %vm2235, %v2202, 0
      %v2252 = vsel %vm2235, %v2203, 0
      %v2255 = vsel %vm2235, %v2204, 0
      %v2258 = vsel %vm2235, %v2205, 0
      %v2261 = vsel %vm2235, %v2206, 0
      %v2264 = vsel %vm2235, %v2207, 0
      %v2267 = vsel %vm2235, %v2208, 0
      %v2270 = vsel %vm2235, %v2209, 0
      %v2273 = vsel %vm2235, %v2210, 0
      %v2276 = vsel %vm2235, %v2211, 0
      %v2279 = vsel %vm2235, %v2212, 0
      %v2282 = vsel %vm2235, %v2213, 0
      %v2285 = vsel %vm2235, %v2214, 0
      %v2288 = vsel %vm2235, %v2215, 0
      %v2291 = vsel %vm2235, %v2216, 0
      %v2294 = vsel %vm2235, %v2217, 0
      %v2297 = vsel %vm2235, %v2218, 0
      %v2300 = vsel %vm2235, %v2219, 0
      %v2303 = vsel %vm2235, %v2220, 0
      %v2306 = vsel %vm2235, %v2221, 0
      %v2309 = vsel %vm2235, %v2222, 0
      %v2312 = vsel %vm2235, %v2223, 0
      %v2315 = vsel %vm2235, %v2224, 0
      %v2318 = vsel %vm2235, %v2225, 0
      %v2321 = vsel %vm2235, %v2226, 0
      %v2324 = vsel %vm2235, %v2227, 0
      %v2327 = vsel %vm2235, %v2228, 0
      %v2330 = vsel %vm2235, %v2229, 0
      %vm2332 = vcmask 1043456
      %v2334 = vsel %vm2332, %v2234, 0
      %2336 = vmatprep.subr.mxu0 0.0
      %2337 = vmatpush1.msra.mxu0 %v2230
      %2338 = vmatprep.subr.mxu0 0.0
      %2339 = vmatpush1.msra.mxu0 %v2231
      %2340 = vmatprep.subr.mxu0 0.0
      %2341 = vmatpush1.msra.mxu0 %v2232
      %2342 = vmatprep.subr.mxu0 0.0
      %2343 = vmatpush1.msra.mxu0 %v2233
      %2344 = vmatprep.subr.mxu0 0.0
      %2345 = vmatpush1.msra.mxu0 %v2334
      %2346 = vmatprep.subr.mxu0 0.0
      %2347 = vmatpush1.msra.mxu0 0.0
      %2348 = vmatprep.subr.mxu0 0.0
      %2349 = vmatpush1.msra.mxu0 0.0
      %2350 = vmatprep.subr.mxu0 0.0
      %2351 = vmatpush1.msra.mxu0 0.0
      %2352 = vmatprep.subr.mxu0 0.0
      %2353 = vmatpush1.msra.mxu0 0.0
      %2354 = vmatprep.subr.mxu0 0.0
      %2355 = vmatpush1.msra.mxu0 0.0
      %2356 = vmatprep.subr.mxu0 0.0
      %2357 = vmatpush1.msra.mxu0 0.0
      %2358 = vmatprep.subr.mxu0 0.0
      %2359 = vmatpush1.msra.mxu0 0.0
      %2360 = vmatprep.subr.mxu0 0.0
      %2361 = vmatpush1.msra.mxu0 0.0
      %2362 = vmatprep.subr.mxu0 0.0
      %2363 = vmatpush1.msra.mxu0 0.0
      %2364 = vmatprep.subr.mxu0 0.0
      %2365 = vmatpush1.msra.mxu0 0.0
      %2366 = vmatprep.subr.mxu0 0.0
      %2367 = vmatpush1.msra.mxu0 0.0
      %2368 = vmatprep.subr.mxu0 0.0
      %2369 = vmatpush1.msra.mxu0 0.0
      %2370 = vmatprep.subr.mxu0 0.0
      %2371 = vmatpush1.msra.mxu0 0.0
      %2372 = vmatprep.subr.mxu0 0.0
      %2373 = vmatpush1.msra.mxu0 0.0
      %2374 = vmatprep.subr.mxu0 0.0
      %2375 = vmatpush1.msra.mxu0 0.0
      %2376 = vmatprep.subr.mxu0 0.0
      %2377 = vmatpush1.msra.mxu0 0.0
      %2378 = vmatprep.subr.mxu0 0.0
      %2379 = vmatpush1.msra.mxu0 0.0
      %2380 = vmatprep.subr.mxu0 0.0
      %2381 = vmatpush1.msra.mxu0 0.0
      %2382 = vmatprep.subr.mxu0 0.0
      %2383 = vmatpush1.msra.mxu0 0.0
      %2384 = vmatprep.subr.mxu0 0.0
      %2385 = vmatpush1.msra.mxu0 0.0
      %2386 = vmatprep.subr.mxu0 0.0
      %2387 = vmatpush1.msra.mxu0 0.0
      %2388 = vmatprep.subr.mxu0 0.0
      %2389 = vmatpush1.msra.mxu0 0.0
      %2390 = vmatprep.subr.mxu0 0.0
      %2391 = vmatpush1.msra.mxu0 0.0
      %2392 = vmatprep.subr.mxu0 0.0
      %2393 = vmatpush1.msra.mxu0 0.0
      %2394 = vmatprep.subr.mxu0 0.0
      %2395 = vmatpush1.msra.mxu0 0.0
      %2396 = vmatprep.subr.mxu0 0.0
      %2397 = vmatpush1.msra.mxu0 0.0
      %2398 = vmatprep.subr.mxu0 0.0
      %2399 = vmatpush1.msra.mxu0 0.0
      %2400 = vmatprep.mubr.f32.mxu0 0.0
      %2401 = vmatmul.mubr.f32.gmra.mrb[0].mxu0 %v2237
      %v2402 = vpop.f32.mrb[0].mxu0
      %v2403 = vadd.f32 0.0, %v2402
      %v2404 = vpop.f32.mrb[0].mxu0
      %2405 = vmatprep.mubr.f32.mxu0 0.0
      %2406 = vmatmul.mubr.f32.gmra.mrb[0].mxu0 %v2240
      %v2407 = vpop.f32.mrb[0].mxu0
      %v2408 = vadd.f32 0.0, %v2407
      %v2409 = vpop.f32.mrb[0].mxu0
      %2410 = vmatprep.mubr.f32.mxu0 0.0
      %2411 = vmatmul.mubr.f32.gmra.mrb[0].mxu0 %v2243
      %v2412 = vpop.f32.mrb[0].mxu0
      %v2413 = vadd.f32 0.0, %v2412
      %v2414 = vpop.f32.mrb[0].mxu0
      %2415 = vmatprep.mubr.f32.mxu0 0.0
      %2416 = vmatmul.mubr.f32.gmra.mrb[0].mxu0 %v2246
      %v2417 = vpop.f32.mrb[0].mxu0
      %v2418 = vadd.f32 0.0, %v2417
      %v2419 = vpop.f32.mrb[0].mxu0
      %2420 = vmatprep.mubr.f32.mxu0 0.0
      %2421 = vmatmul.mubr.f32.gmra.mrb[0].mxu0 %v2249
      %v2422 = vpop.f32.mrb[0].mxu0
      %v2423 = vadd.f32 0.0, %v2422
      %v2424 = vpop.f32.mrb[0].mxu0
      %2425 = vmatprep.mubr.f32.mxu0 0.0
      %2426 = vmatmul.mubr.f32.gmra.mrb[0].mxu0 %v2252
      %v2427 = vpop.f32.mrb[0].mxu0
      %v2428 = vadd.f32 0.0, %v2427
      %v2429 = vpop.f32.mrb[0].mxu0
      %2430 = vmatprep.mubr.f32.mxu0 0.0
      %2431 = vmatmul.mubr.f32.gmra.mrb[0].mxu0 %v2255
      %v2432 = vpop.f32.mrb[0].mxu0
      %v2433 = vadd.f32 0.0, %v2432
      %v2434 = vpop.f32.mrb[0].mxu0
      %2435 = vmatprep.mubr.f32.mxu0 0.0
      %2436 = vmatmul.mubr.f32.gmra.mrb[0].mxu0 %v2258
      %v2437 = vpop.f32.mrb[0].mxu0
      %v2438 = vadd.f32 0.0, %v2437
      %v2439 = vpop.f32.mrb[0].mxu0
      %2440 = vmatprep.mubr.f32.mxu0 0.0
      %2441 = vmatmul.mubr.f32.gmra.mrb[0].mxu0 %v2261
      %v2442 = vpop.f32.mrb[0].mxu0
      %v2443 = vadd.f32 0.0, %v2442
      %v2444 = vpop.f32.mrb[0].mxu0
      %2445 = vmatprep.mubr.f32.mxu0 0.0
      %2446 = vmatmul.mubr.f32.gmra.mrb[0].mxu0 %v2264
      %v2447 = vpop.f32.mrb[0].mxu0
      %v2448 = vadd.f32 0.0, %v2447
      %v2449 = vpop.f32.mrb[0].mxu0
      %2450 = vmatprep.mubr.f32.mxu0 0.0
      %2451 = vmatmul.mubr.f32.gmra.mrb[0].mxu0 %v2267
      %v2452 = vpop.f32.mrb[0].mxu0
      %v2453 = vadd.f32 0.0, %v2452
      %v2454 = vpop.f32.mrb[0].mxu0
      %2455 = vmatprep.mubr.f32.mxu0 0.0
      %2456 = vmatmul.mubr.f32.gmra.mrb[0].mxu0 %v2270
      %v2457 = vpop.f32.mrb[0].mxu0
      %v2458 = vadd.f32 0.0, %v2457
      %v2459 = vpop.f32.mrb[0].mxu0
      %2460 = vmatprep.mubr.f32.mxu0 0.0
      %2461 = vmatmul.mubr.f32.gmra.mrb[0].mxu0 %v2273
      %v2462 = vpop.f32.mrb[0].mxu0
      %v2463 = vadd.f32 0.0, %v2462
      %v2464 = vpop.f32.mrb[0].mxu0
      %2465 = vmatprep.mubr.f32.mxu0 0.0
      %2466 = vmatmul.mubr.f32.gmra.mrb[0].mxu0 %v2276
      %v2467 = vpop.f32.mrb[0].mxu0
      %v2468 = vadd.f32 0.0, %v2467
      %v2469 = vpop.f32.mrb[0].mxu0
      %2470 = vmatprep.mubr.f32.mxu0 0.0
      %2471 = vmatmul.mubr.f32.gmra.mrb[0].mxu0 %v2279
      %v2472 = vpop.f32.mrb[0].mxu0
      %v2473 = vadd.f32 0.0, %v2472
      %v2474 = vpop.f32.mrb[0].mxu0
      %2475 = vmatprep.mubr.f32.mxu0 0.0
      %2476 = vmatmul.mubr.f32.gmra.mrb[0].mxu0 %v2282
      %v2477 = vpop.f32.mrb[0].mxu0
      %v2478 = vadd.f32 0.0, %v2477
      %v2479 = vpop.f32.mrb[0].mxu0
      %2480 = vmatprep.mubr.f32.mxu0 0.0
      %2481 = vmatmul.mubr.f32.gmra.mrb[0].mxu0 %v2285
      %v2482 = vpop.f32.mrb[0].mxu0
      %v2483 = vadd.f32 0.0, %v2482
      %v2484 = vpop.f32.mrb[0].mxu0
      %2485 = vmatprep.mubr.f32.mxu0 0.0
      %2486 = vmatmul.mubr.f32.gmra.mrb[0].mxu0 %v2288
      %v2487 = vpop.f32.mrb[0].mxu0
      %v2488 = vadd.f32 0.0, %v2487
      %v2489 = vpop.f32.mrb[0].mxu0
      %2490 = vmatprep.mubr.f32.mxu0 0.0
      %2491 = vmatmul.mubr.f32.gmra.mrb[0].mxu0 %v2291
      %v2492 = vpop.f32.mrb[0].mxu0
      %v2493 = vadd.f32 0.0, %v2492
      %v2494 = vpop.f32.mrb[0].mxu0
      %2495 = vmatprep.mubr.f32.mxu0 0.0
      %2496 = vmatmul.mubr.f32.gmra.mrb[0].mxu0 %v2294
      %v2497 = vpop.f32.mrb[0].mxu0
      %v2498 = vadd.f32 0.0, %v2497
      %v2499 = vpop.f32.mrb[0].mxu0
      %2500 = vmatprep.mubr.f32.mxu0 0.0
      %2501 = vmatmul.mubr.f32.gmra.mrb[0].mxu0 %v2297
      %v2502 = vpop.f32.mrb[0].mxu0
      %v2503 = vadd.f32 0.0, %v2502
      %v2504 = vpop.f32.mrb[0].mxu0
      %2505 = vmatprep.mubr.f32.mxu0 0.0
      %2506 = vmatmul.mubr.f32.gmra.mrb[0].mxu0 %v2300
      %v2507 = vpop.f32.mrb[0].mxu0
      %v2508 = vadd.f32 0.0, %v2507
      %v2509 = vpop.f32.mrb[0].mxu0
      %2510 = vmatprep.mubr.f32.mxu0 0.0
      %2511 = vmatmul.mubr.f32.gmra.mrb[0].mxu0 %v2303
      %v2512 = vpop.f32.mrb[0].mxu0
      %v2513 = vadd.f32 0.0, %v2512
      %v2514 = vpop.f32.mrb[0].mxu0
      %2515 = vmatprep.mubr.f32.mxu0 0.0
      %2516 = vmatmul.mubr.f32.gmra.mrb[0].mxu0 %v2306
      %v2517 = vpop.f32.mrb[0].mxu0
      %v2518 = vadd.f32 0.0, %v2517
      %v2519 = vpop.f32.mrb[0].mxu0
      %2520 = vmatprep.mubr.f32.mxu0 0.0
      %2521 = vmatmul.mubr.f32.gmra.mrb[0].mxu0 %v2309
      %v2522 = vpop.f32.mrb[0].mxu0
      %v2523 = vadd.f32 0.0, %v2522
      %v2524 = vpop.f32.mrb[0].mxu0
      %2525 = vmatprep.mubr.f32.mxu0 0.0
      %2526 = vmatmul.mubr.f32.gmra.mrb[0].mxu0 %v2312
      %v2527 = vpop.f32.mrb[0].mxu0
      %v2528 = vadd.f32 0.0, %v2527
      %v2529 = vpop.f32.mrb[0].mxu0
      %2530 = vmatprep.mubr.f32.mxu0 0.0
      %2531 = vmatmul.mubr.f32.gmra.mrb[0].mxu0 %v2315
      %v2532 = vpop.f32.mrb[0].mxu0
      %v2533 = vadd.f32 0.0, %v2532
      %v2534 = vpop.f32.mrb[0].mxu0
      %2535 = vmatprep.mubr.f32.mxu0 0.0
      %2536 = vmatmul.mubr.f32.gmra.mrb[0].mxu0 %v2318
      %v2537 = vpop.f32.mrb[0].mxu0
      %v2538 = vadd.f32 0.0, %v2537
      %v2539 = vpop.f32.mrb[0].mxu0
      %2540 = vmatprep.mubr.f32.mxu0 0.0
      %2541 = vmatmul.mubr.f32.gmra.mrb[0].mxu0 %v2321
      %v2542 = vpop.f32.mrb[0].mxu0
      %v2543 = vadd.f32 0.0, %v2542
      %v2544 = vpop.f32.mrb[0].mxu0
      %2545 = vmatprep.mubr.f32.mxu0 0.0
      %2546 = vmatmul.mubr.f32.gmra.mrb[0].mxu0 %v2324
      %v2547 = vpop.f32.mrb[0].mxu0
      %v2548 = vadd.f32 0.0, %v2547
      %v2549 = vpop.f32.mrb[0].mxu0
      %2550 = vmatprep.mubr.f32.mxu0 0.0
      %2551 = vmatmul.mubr.f32.gmra.mrb[0].mxu0 %v2327
      %v2552 = vpop.f32.mrb[0].mxu0
      %v2553 = vadd.f32 0.0, %v2552
      %v2554 = vpop.f32.mrb[0].mxu0
      %2555 = vmatprep.mubr.f32.mxu0 0.0
      %2556 = vmatmul.mubr.f32.gmra.mrb[0].mxu0 %v2330
      %v2557 = vpop.f32.mrb[0].mxu0
      %v2558 = vadd.f32 0.0, %v2557
      %v2559 = vpop.f32.mrb[0].mxu0
      %2560 = vdwg.mxu0
      %v2561 = vld [vmem:[%s5] sm:$0x1]
      %v2563 = vlaneseq
      %v2564 = vshrl.u32 %v2563, 7
      %v2565 = vsub.s32 0, %v2564
      %v2566 = vrot.slane %v2561, %v2565
      %v2568 = vmul.f32 %v2403, %v2566
      %v2569 = vmul.f32 %v2408, %v2566
      %v2570 = vmul.f32 %v2413, %v2566
      %v2571 = vmul.f32 %v2418, %v2566
      %v2572 = vmul.f32 %v2423, %v2566
      %v2573 = vmul.f32 %v2428, %v2566
      %v2574 = vmul.f32 %v2433, %v2566
      %v2575 = vmul.f32 %v2438, %v2566
      %v2576 = vmul.f32 %v2443, %v2566
      %v2577 = vmul.f32 %v2448, %v2566
      %v2578 = vmul.f32 %v2453, %v2566
      %v2579 = vmul.f32 %v2458, %v2566
      %v2580 = vmul.f32 %v2463, %v2566
      %v2581 = vmul.f32 %v2468, %v2566
      %v2582 = vmul.f32 %v2473, %v2566
      %v2583 = vmul.f32 %v2478, %v2566
      %v2584 = vmul.f32 %v2483, %v2566
      %v2585 = vmul.f32 %v2488, %v2566
      %v2586 = vmul.f32 %v2493, %v2566
      %v2587 = vmul.f32 %v2498, %v2566
      %v2588 = vmul.f32 %v2503, %v2566
      %v2589 = vmul.f32 %v2508, %v2566
      %v2590 = vmul.f32 %v2513, %v2566
      %v2591 = vmul.f32 %v2518, %v2566
      %v2592 = vmul.f32 %v2523, %v2566
      %v2593 = vmul.f32 %v2528, %v2566
      %v2594 = vmul.f32 %v2533, %v2566
      %v2595 = vmul.f32 %v2538, %v2566
      %v2596 = vmul.f32 %v2543, %v2566
      %v2597 = vmul.f32 %v2548, %v2566
      %v2598 = vmul.f32 %v2553, %v2566
      %v2599 = vmul.f32 %v2558, %v2566
      %v2600 = vld [vmem:[%s6] sm:$0x1]
      %v2602 = vlaneseq
      %v2603 = vshrl.u32 %v2602, 7
      %v2604 = vsub.s32 0, %v2603
      %v2605 = vrot.slane %v2600, %v2604
      %v2607 = vadd.f32 %v2568, %v2605
      %v2608 = vadd.f32 %v2569, %v2605
      %v2609 = vadd.f32 %v2570, %v2605
      %v2610 = vadd.f32 %v2571, %v2605
      %v2611 = vadd.f32 %v2572, %v2605
      %v2612 = vadd.f32 %v2573, %v2605
      %v2613 = vadd.f32 %v2574, %v2605
      %v2614 = vadd.f32 %v2575, %v2605
      %v2615 = vadd.f32 %v2576, %v2605
      %v2616 = vadd.f32 %v2577, %v2605
      %v2617 = vadd.f32 %v2578, %v2605
      %v2618 = vadd.f32 %v2579, %v2605
      %v2619 = vadd.f32 %v2580, %v2605
      %v2620 = vadd.f32 %v2581, %v2605
      %v2621 = vadd.f32 %v2582, %v2605
      %v2622 = vadd.f32 %v2583, %v2605
      %v2623 = vadd.f32 %v2584, %v2605
      %v2624 = vadd.f32 %v2585, %v2605
      %v2625 = vadd.f32 %v2586, %v2605
      %v2626 = vadd.f32 %v2587, %v2605
      %v2627 = vadd.f32 %v2588, %v2605
      %v2628 = vadd.f32 %v2589, %v2605
      %v2629 = vadd.f32 %v2590, %v2605
      %v2630 = vadd.f32 %v2591, %v2605
      %v2631 = vadd.f32 %v2592, %v2605
      %v2632 = vadd.f32 %v2593, %v2605
      %v2633 = vadd.f32 %v2594, %v2605
      %v2634 = vadd.f32 %v2595, %v2605
      %v2635 = vadd.f32 %v2596, %v2605
      %v2636 = vadd.f32 %v2597, %v2605
      %v2637 = vadd.f32 %v2598, %v2605
      %v2638 = vadd.f32 %v2599, %v2605
      %v2639 = vmax.f32 %v2607, 0.0
      %v2640 = vmax.f32 %v2608, 0.0
      %v2641 = vmax.f32 %v2609, 0.0
      %v2642 = vmax.f32 %v2610, 0.0
      %v2643 = vmax.f32 %v2611, 0.0
      %v2644 = vmax.f32 %v2612, 0.0
      %v2645 = vmax.f32 %v2613, 0.0
      %v2646 = vmax.f32 %v2614, 0.0
      %v2647 = vmax.f32 %v2615, 0.0
      %v2648 = vmax.f32 %v2616, 0.0
      %v2649 = vmax.f32 %v2617, 0.0
      %v2650 = vmax.f32 %v2618, 0.0
      %v2651 = vmax.f32 %v2619, 0.0
      %v2652 = vmax.f32 %v2620, 0.0
      %v2653 = vmax.f32 %v2621, 0.0
      %v2654 = vmax.f32 %v2622, 0.0
      %v2655 = vmax.f32 %v2623, 0.0
      %v2656 = vmax.f32 %v2624, 0.0
      %v2657 = vmax.f32 %v2625, 0.0
      %v2658 = vmax.f32 %v2626, 0.0
      %v2659 = vmax.f32 %v2627, 0.0
      %v2660 = vmax.f32 %v2628, 0.0
      %v2661 = vmax.f32 %v2629, 0.0
      %v2662 = vmax.f32 %v2630, 0.0
      %v2663 = vmax.f32 %v2631, 0.0
      %v2664 = vmax.f32 %v2632, 0.0
      %v2665 = vmax.f32 %v2633, 0.0
      %v2666 = vmax.f32 %v2634, 0.0
      %v2667 = vmax.f32 %v2635, 0.0
      %v2668 = vmax.f32 %v2636, 0.0
      %v2669 = vmax.f32 %v2637, 0.0
      %v2670 = vmax.f32 %v2638, 0.0
      %v2671 = vld [vmem:[%s7] sm:$0xf]
      %v2673 = vsel %vm1967, %v2639, 0
      %v2676 = vsel %vm1967, %v2640, 0
      %v2679 = vsel %vm1967, %v2641, 0
      %v2682 = vsel %vm1967, %v2642, 0
      %v2685 = vsel %vm1967, %v2643, 0
      %v2688 = vsel %vm1967, %v2644, 0
      %v2691 = vsel %vm1967, %v2645, 0
      %v2694 = vsel %vm1967, %v2646, 0
      %v2697 = vsel %vm1967, %v2647, 0
      %v2700 = vsel %vm1967, %v2648, 0
      %v2703 = vsel %vm1967, %v2649, 0
      %v2706 = vsel %vm1967, %v2650, 0
      %v2709 = vsel %vm1967, %v2651, 0
      %v2712 = vsel %vm1967, %v2652, 0
      %v2715 = vsel %vm1967, %v2653, 0
      %v2718 = vsel %vm1967, %v2654, 0
      %v2721 = vsel %vm1967, %v2655, 0
      %v2724 = vsel %vm1967, %v2656, 0
      %v2727 = vsel %vm1967, %v2657, 0
      %v2730 = vsel %vm1967, %v2658, 0
      %v2733 = vsel %vm1967, %v2659, 0
      %v2736 = vsel %vm1967, %v2660, 0
      %v2739 = vsel %vm1967, %v2661, 0
      %v2742 = vsel %vm1967, %v2662, 0
      %v2745 = vsel %vm1967, %v2663, 0
      %v2748 = vsel %vm1967, %v2664, 0
      %v2751 = vsel %vm1967, %v2665, 0
      %v2754 = vsel %vm1967, %v2666, 0
      %v2757 = vsel %vm1967, %v2667, 0
      %v2760 = vsel %vm1967, %v2668, 0
      %v2763 = vsel %vm1967, %v2669, 0
      %v2766 = vsel %vm1967, %v2670, 0
      %v2769 = vsel %vm2332, %v2671, 0
      %2771 = vmatprep.subr.mxu0 0.0
      %2772 = vmatpush1.msra.mxu0 %v2769
      %2773 = vmatprep.subr.mxu0 0.0
      %2774 = vmatpush1.msra.mxu0 0.0
      %2775 = vmatprep.subr.mxu0 0.0
      %2776 = vmatpush1.msra.mxu0 0.0
      %2777 = vmatprep.subr.mxu0 0.0
      %2778 = vmatpush1.msra.mxu0 0.0
      %2779 = vmatprep.subr.mxu0 0.0
      %2780 = vmatpush1.msra.mxu0 0.0
      %2781 = vmatprep.subr.mxu0 0.0
      %2782 = vmatpush1.msra.mxu0 0.0
      %2783 = vmatprep.subr.mxu0 0.0
      %2784 = vmatpush1.msra.mxu0 0.0
      %2785 = vmatprep.subr.mxu0 0.0
      %2786 = vmatpush1.msra.mxu0 0.0
      %2787 = vmatprep.subr.mxu0 0.0
      %2788 = vmatpush1.msra.mxu0 0.0
      %2789 = vmatprep.subr.mxu0 0.0
      %2790 = vmatpush1.msra.mxu0 0.0
      %2791 = vmatprep.subr.mxu0 0.0
      %2792 = vmatpush1.msra.mxu0 0.0
      %2793 = vmatprep.subr.mxu0 0.0
      %2794 = vmatpush1.msra.mxu0 0.0
      %2795 = vmatprep.subr.mxu0 0.0
      %2796 = vmatpush1.msra.mxu0 0.0
      %2797 = vmatprep.subr.mxu0 0.0
      %2798 = vmatpush1.msra.mxu0 0.0
      %2799 = vmatprep.subr.mxu0 0.0
      %2800 = vmatpush1.msra.mxu0 0.0
      %2801 = vmatprep.subr.mxu0 0.0
      %2802 = vmatpush1.msra.mxu0 0.0
      %2803 = vmatprep.subr.mxu0 0.0
      %2804 = vmatpush1.msra.mxu0 0.0
      %2805 = vmatprep.subr.mxu0 0.0
      %2806 = vmatpush1.msra.mxu0 0.0
      %2807 = vmatprep.subr.mxu0 0.0
      %2808 = vmatpush1.msra.mxu0 0.0
      %2809 = vmatprep.subr.mxu0 0.0
      %2810 = vmatpush1.msra.mxu0 0.0
      %2811 = vmatprep.subr.mxu0 0.0
      %2812 = vmatpush1.msra.mxu0 0.0
      %2813 = vmatprep.subr.mxu0 0.0
      %2814 = vmatpush1.msra.mxu0 0.0
      %2815 = vmatprep.subr.mxu0 0.0
      %2816 = vmatpush1.msra.mxu0 0.0
      %2817 = vmatprep.subr.mxu0 0.0
      %2818 = vmatpush1.msra.mxu0 0.0
      %2819 = vmatprep.subr.mxu0 0.0
      %2820 = vmatpush1.msra.mxu0 0.0
      %2821 = vmatprep.subr.mxu0 0.0
      %2822 = vmatpush1.msra.mxu0 0.0
      %2823 = vmatprep.subr.mxu0 0.0
      %2824 = vmatpush1.msra.mxu0 0.0
      %2825 = vmatprep.subr.mxu0 0.0
      %2826 = vmatpush1.msra.mxu0 0.0
      %2827 = vmatprep.subr.mxu0 0.0
      %2828 = vmatpush1.msra.mxu0 0.0
      %2829 = vmatprep.subr.mxu0 0.0
      %2830 = vmatpush1.msra.mxu0 0.0
      %2831 = vmatprep.subr.mxu0 0.0
      %2832 = vmatpush1.msra.mxu0 0.0
      %2833 = vmatprep.subr.mxu0 0.0
      %2834 = vmatpush1.msra.mxu0 0.0
      %2835 = vmatprep.mubr.f32.mxu0 0.0
      %2836 = vmatmul.mubr.f32.gmra.mrb[0].mxu0 %v2673
      %v2837 = vpop.f32.mrb[0].mxu0
      %v2838 = vadd.f32 0.0, %v2837
      %v2839 = vpop.f32.mrb[0].mxu0
      %2840 = vmatprep.mubr.f32.mxu0 0.0
      %2841 = vmatmul.mubr.f32.gmra.mrb[0].mxu0 %v2676
      %v2842 = vpop.f32.mrb[0].mxu0
      %v2843 = vadd.f32 0.0, %v2842
      %v2844 = vpop.f32.mrb[0].mxu0
      %2845 = vmatprep.mubr.f32.mxu0 0.0
      %2846 = vmatmul.mubr.f32.gmra.mrb[0].mxu0 %v2679
      %v2847 = vpop.f32.mrb[0].mxu0
      %v2848 = vadd.f32 0.0, %v2847
      %v2849 = vpop.f32.mrb[0].mxu0
      %2850 = vmatprep.mubr.f32.mxu0 0.0
      %2851 = vmatmul.mubr.f32.gmra.mrb[0].mxu0 %v2682
      %v2852 = vpop.f32.mrb[0].mxu0
      %v2853 = vadd.f32 0.0, %v2852
      %v2854 = vpop.f32.mrb[0].mxu0
      %2855 = vmatprep.mubr.f32.mxu0 0.0
      %2856 = vmatmul.mubr.f32.gmra.mrb[0].mxu0 %v2685
      %v2857 = vpop.f32.mrb[0].mxu0
      %v2858 = vadd.f32 0.0, %v2857
      %v2859 = vpop.f32.mrb[0].mxu0
      %2860 = vmatprep.mubr.f32.mxu0 0.0
      %2861 = vmatmul.mubr.f32.gmra.mrb[0].mxu0 %v2688
      %v2862 = vpop.f32.mrb[0].mxu0
      %v2863 = vadd.f32 0.0, %v2862
      %v2864 = vpop.f32.mrb[0].mxu0
      %2865 = vmatprep.mubr.f32.mxu0 0.0
      %2866 = vmatmul.mubr.f32.gmra.mrb[0].mxu0 %v2691
      %v2867 = vpop.f32.mrb[0].mxu0
      %v2868 = vadd.f32 0.0, %v2867
      %v2869 = vpop.f32.mrb[0].mxu0
      %2870 = vmatprep.mubr.f32.mxu0 0.0
      %2871 = vmatmul.mubr.f32.gmra.mrb[0].mxu0 %v2694
      %v2872 = vpop.f32.mrb[0].mxu0
      %v2873 = vadd.f32 0.0, %v2872
      %v2874 = vpop.f32.mrb[0].mxu0
      %2875 = vmatprep.mubr.f32.mxu0 0.0
      %2876 = vmatmul.mubr.f32.gmra.mrb[0].mxu0 %v2697
      %v2877 = vpop.f32.mrb[0].mxu0
      %v2878 = vadd.f32 0.0, %v2877
      %v2879 = vpop.f32.mrb[0].mxu0
      %2880 = vmatprep.mubr.f32.mxu0 0.0
      %2881 = vmatmul.mubr.f32.gmra.mrb[0].mxu0 %v2700
      %v2882 = vpop.f32.mrb[0].mxu0
      %v2883 = vadd.f32 0.0, %v2882
      %v2884 = vpop.f32.mrb[0].mxu0
      %2885 = vmatprep.mubr.f32.mxu0 0.0
      %2886 = vmatmul.mubr.f32.gmra.mrb[0].mxu0 %v2703
      %v2887 = vpop.f32.mrb[0].mxu0
      %v2888 = vadd.f32 0.0, %v2887
      %v2889 = vpop.f32.mrb[0].mxu0
      %2890 = vmatprep.mubr.f32.mxu0 0.0
      %2891 = vmatmul.mubr.f32.gmra.mrb[0].mxu0 %v2706
      %v2892 = vpop.f32.mrb[0].mxu0
      %v2893 = vadd.f32 0.0, %v2892
      %v2894 = vpop.f32.mrb[0].mxu0
      %2895 = vmatprep.mubr.f32.mxu0 0.0
      %2896 = vmatmul.mubr.f32.gmra.mrb[0].mxu0 %v2709
      %v2897 = vpop.f32.mrb[0].mxu0
      %v2898 = vadd.f32 0.0, %v2897
      %v2899 = vpop.f32.mrb[0].mxu0
      %2900 = vmatprep.mubr.f32.mxu0 0.0
      %2901 = vmatmul.mubr.f32.gmra.mrb[0].mxu0 %v2712
      %v2902 = vpop.f32.mrb[0].mxu0
      %v2903 = vadd.f32 0.0, %v2902
      %v2904 = vpop.f32.mrb[0].mxu0
      %2905 = vmatprep.mubr.f32.mxu0 0.0
      %2906 = vmatmul.mubr.f32.gmra.mrb[0].mxu0 %v2715
      %v2907 = vpop.f32.mrb[0].mxu0
      %v2908 = vadd.f32 0.0, %v2907
      %v2909 = vpop.f32.mrb[0].mxu0
      %2910 = vmatprep.mubr.f32.mxu0 0.0
      %2911 = vmatmul.mubr.f32.gmra.mrb[0].mxu0 %v2718
      %v2912 = vpop.f32.mrb[0].mxu0
      %v2913 = vadd.f32 0.0, %v2912
      %v2914 = vpop.f32.mrb[0].mxu0
      %2915 = vmatprep.mubr.f32.mxu0 0.0
      %2916 = vmatmul.mubr.f32.gmra.mrb[0].mxu0 %v2721
      %v2917 = vpop.f32.mrb[0].mxu0
      %v2918 = vadd.f32 0.0, %v2917
      %v2919 = vpop.f32.mrb[0].mxu0
      %2920 = vmatprep.mubr.f32.mxu0 0.0
      %2921 = vmatmul.mubr.f32.gmra.mrb[0].mxu0 %v2724
      %v2922 = vpop.f32.mrb[0].mxu0
      %v2923 = vadd.f32 0.0, %v2922
      %v2924 = vpop.f32.mrb[0].mxu0
      %2925 = vmatprep.mubr.f32.mxu0 0.0
      %2926 = vmatmul.mubr.f32.gmra.mrb[0].mxu0 %v2727
      %v2927 = vpop.f32.mrb[0].mxu0
      %v2928 = vadd.f32 0.0, %v2927
      %v2929 = vpop.f32.mrb[0].mxu0
      %2930 = vmatprep.mubr.f32.mxu0 0.0
      %2931 = vmatmul.mubr.f32.gmra.mrb[0].mxu0 %v2730
      %v2932 = vpop.f32.mrb[0].mxu0
      %v2933 = vadd.f32 0.0, %v2932
      %v2934 = vpop.f32.mrb[0].mxu0
      %2935 = vmatprep.mubr.f32.mxu0 0.0
      %2936 = vmatmul.mubr.f32.gmra.mrb[0].mxu0 %v2733
      %v2937 = vpop.f32.mrb[0].mxu0
      %v2938 = vadd.f32 0.0, %v2937
      %v2939 = vpop.f32.mrb[0].mxu0
      %2940 = vmatprep.mubr.f32.mxu0 0.0
      %2941 = vmatmul.mubr.f32.gmra.mrb[0].mxu0 %v2736
      %v2942 = vpop.f32.mrb[0].mxu0
      %v2943 = vadd.f32 0.0, %v2942
      %v2944 = vpop.f32.mrb[0].mxu0
      %2945 = vmatprep.mubr.f32.mxu0 0.0
      %2946 = vmatmul.mubr.f32.gmra.mrb[0].mxu0 %v2739
      %v2947 = vpop.f32.mrb[0].mxu0
      %v2948 = vadd.f32 0.0, %v2947
      %v2949 = vpop.f32.mrb[0].mxu0
      %2950 = vmatprep.mubr.f32.mxu0 0.0
      %2951 = vmatmul.mubr.f32.gmra.mrb[0].mxu0 %v2742
      %v2952 = vpop.f32.mrb[0].mxu0
      %v2953 = vadd.f32 0.0, %v2952
      %v2954 = vpop.f32.mrb[0].mxu0
      %2955 = vmatprep.mubr.f32.mxu0 0.0
      %2956 = vmatmul.mubr.f32.gmra.mrb[0].mxu0 %v2745
      %v2957 = vpop.f32.mrb[0].mxu0
      %v2958 = vadd.f32 0.0, %v2957
      %v2959 = vpop.f32.mrb[0].mxu0
      %2960 = vmatprep.mubr.f32.mxu0 0.0
      %2961 = vmatmul.mubr.f32.gmra.mrb[0].mxu0 %v2748
      %v2962 = vpop.f32.mrb[0].mxu0
      %v2963 = vadd.f32 0.0, %v2962
      %v2964 = vpop.f32.mrb[0].mxu0
      %2965 = vmatprep.mubr.f32.mxu0 0.0
      %2966 = vmatmul.mubr.f32.gmra.mrb[0].mxu0 %v2751
      %v2967 = vpop.f32.mrb[0].mxu0
      %v2968 = vadd.f32 0.0, %v2967
      %v2969 = vpop.f32.mrb[0].mxu0
      %2970 = vmatprep.mubr.f32.mxu0 0.0
      %2971 = vmatmul.mubr.f32.gmra.mrb[0].mxu0 %v2754
      %v2972 = vpop.f32.mrb[0].mxu0
      %v2973 = vadd.f32 0.0, %v2972
      %v2974 = vpop.f32.mrb[0].mxu0
      %2975 = vmatprep.mubr.f32.mxu0 0.0
      %2976 = vmatmul.mubr.f32.gmra.mrb[0].mxu0 %v2757
      %v2977 = vpop.f32.mrb[0].mxu0
      %v2978 = vadd.f32 0.0, %v2977
      %v2979 = vpop.f32.mrb[0].mxu0
      %2980 = vmatprep.mubr.f32.mxu0 0.0
      %2981 = vmatmul.mubr.f32.gmra.mrb[0].mxu0 %v2760
      %v2982 = vpop.f32.mrb[0].mxu0
      %v2983 = vadd.f32 0.0, %v2982
      %v2984 = vpop.f32.mrb[0].mxu0
      %2985 = vmatprep.mubr.f32.mxu0 0.0
      %2986 = vmatmul.mubr.f32.gmra.mrb[0].mxu0 %v2763
      %v2987 = vpop.f32.mrb[0].mxu0
      %v2988 = vadd.f32 0.0, %v2987
      %v2989 = vpop.f32.mrb[0].mxu0
      %2990 = vmatprep.mubr.f32.mxu0 0.0
      %2991 = vmatmul.mubr.f32.gmra.mrb[0].mxu0 %v2766
      %v2992 = vpop.f32.mrb[0].mxu0
      %v2993 = vadd.f32 0.0, %v2992
      %v2994 = vpop.f32.mrb[0].mxu0
      %2995 = vdwg.mxu0
      %v2996 = vld [vmem:[%s8] sm:$0x1]
      %v2998 = vlaneseq
      %v2999 = vshrl.u32 %v2998, 7
      %v3000 = vsub.s32 0, %v2999
      %v3001 = vrot.slane %v2996, %v3000
      %v3003 = vmul.f32 %v2838, %v3001
      %v3004 = vmul.f32 %v2843, %v3001
      %v3005 = vmul.f32 %v2848, %v3001
      %v3006 = vmul.f32 %v2853, %v3001
      %v3007 = vmul.f32 %v2858, %v3001
      %v3008 = vmul.f32 %v2863, %v3001
      %v3009 = vmul.f32 %v2868, %v3001
      %v3010 = vmul.f32 %v2873, %v3001
      %v3011 = vmul.f32 %v2878, %v3001
      %v3012 = vmul.f32 %v2883, %v3001
      %v3013 = vmul.f32 %v2888, %v3001
      %v3014 = vmul.f32 %v2893, %v3001
      %v3015 = vmul.f32 %v2898, %v3001
      %v3016 = vmul.f32 %v2903, %v3001
      %v3017 = vmul.f32 %v2908, %v3001
      %v3018 = vmul.f32 %v2913, %v3001
      %v3019 = vmul.f32 %v2918, %v3001
      %v3020 = vmul.f32 %v2923, %v3001
      %v3021 = vmul.f32 %v2928, %v3001
      %v3022 = vmul.f32 %v2933, %v3001
      %v3023 = vmul.f32 %v2938, %v3001
      %v3024 = vmul.f32 %v2943, %v3001
      %v3025 = vmul.f32 %v2948, %v3001
      %v3026 = vmul.f32 %v2953, %v3001
      %v3027 = vmul.f32 %v2958, %v3001
      %v3028 = vmul.f32 %v2963, %v3001
      %v3029 = vmul.f32 %v2968, %v3001
      %v3030 = vmul.f32 %v2973, %v3001
      %v3031 = vmul.f32 %v2978, %v3001
      %v3032 = vmul.f32 %v2983, %v3001
      %v3033 = vmul.f32 %v2988, %v3001
      %v3034 = vmul.f32 %v2993, %v3001
      %v3035 = vld [vmem:[%s9] sm:$0x1]
      %v3037 = vlaneseq
      %v3038 = vshrl.u32 %v3037, 7
      %v3039 = vsub.s32 0, %v3038
      %v3040 = vrot.slane %v3035, %v3039
      %v3042 = vadd.f32 %v3003, %v3040
      %v3043 = vadd.f32 %v3004, %v3040
      %v3044 = vadd.f32 %v3005, %v3040
      %v3045 = vadd.f32 %v3006, %v3040
      %v3046 = vadd.f32 %v3007, %v3040
      %v3047 = vadd.f32 %v3008, %v3040
      %v3048 = vadd.f32 %v3009, %v3040
      %v3049 = vadd.f32 %v3010, %v3040
      %v3050 = vadd.f32 %v3011, %v3040
      %v3051 = vadd.f32 %v3012, %v3040
      %v3052 = vadd.f32 %v3013, %v3040
      %v3053 = vadd.f32 %v3014, %v3040
      %v3054 = vadd.f32 %v3015, %v3040
      %v3055 = vadd.f32 %v3016, %v3040
      %v3056 = vadd.f32 %v3017, %v3040
      %v3057 = vadd.f32 %v3018, %v3040
      %v3058 = vadd.f32 %v3019, %v3040
      %v3059 = vadd.f32 %v3020, %v3040
      %v3060 = vadd.f32 %v3021, %v3040
      %v3061 = vadd.f32 %v3022, %v3040
      %v3062 = vadd.f32 %v3023, %v3040
      %v3063 = vadd.f32 %v3024, %v3040
      %v3064 = vadd.f32 %v3025, %v3040
      %v3065 = vadd.f32 %v3026, %v3040
      %v3066 = vadd.f32 %v3027, %v3040
      %v3067 = vadd.f32 %v3028, %v3040
      %v3068 = vadd.f32 %v3029, %v3040
      %v3069 = vadd.f32 %v3030, %v3040
      %v3070 = vadd.f32 %v3031, %v3040
      %v3071 = vadd.f32 %v3032, %v3040
      %v3072 = vadd.f32 %v3033, %v3040
      %v3073 = vadd.f32 %v3034, %v3040
      %v3074 = vadd.f32 %v3042, %v360
      %v3075 = vadd.f32 %v3043, %v361
      %v3076 = vadd.f32 %v3044, %v362
      %v3077 = vadd.f32 %v3045, %v363
      %v3078 = vadd.f32 %v3046, %v364
      %v3079 = vadd.f32 %v3047, %v365
      %v3080 = vadd.f32 %v3048, %v366
      %v3081 = vadd.f32 %v3049, %v367
      %v3082 = vadd.f32 %v3050, %v368
      %v3083 = vadd.f32 %v3051, %v369
      %v3084 = vadd.f32 %v3052, %v370
      %v3085 = vadd.f32 %v3053, %v371
      %v3086 = vadd.f32 %v3054, %v372
      %v3087 = vadd.f32 %v3055, %v373
      %v3088 = vadd.f32 %v3056, %v374
      %v3089 = vadd.f32 %v3057, %v375
      %v3090 = vadd.f32 %v3058, %v376
      %v3091 = vadd.f32 %v3059, %v377
      %v3092 = vadd.f32 %v3060, %v378
      %v3093 = vadd.f32 %v3061, %v379
      %v3094 = vadd.f32 %v3062, %v380
      %v3095 = vadd.f32 %v3063, %v381
      %v3096 = vadd.f32 %v3064, %v382
      %v3097 = vadd.f32 %v3065, %v383
      %v3098 = vadd.f32 %v3066, %v384
      %v3099 = vadd.f32 %v3067, %v385
      %v3100 = vadd.f32 %v3068, %v386
      %v3101 = vadd.f32 %v3069, %v387
      %v3102 = vadd.f32 %v3070, %v388
      %v3103 = vadd.f32 %v3071, %v389
      %v3104 = vadd.f32 %v3072, %v390
      %v3105 = vadd.f32 %v3073, %v391
      %v3106 = vmax.f32 %v3074, 0.0
      %v3107 = vmax.f32 %v3075, 0.0
      %v3108 = vmax.f32 %v3076, 0.0
      %v3109 = vmax.f32 %v3077, 0.0
      %v3110 = vmax.f32 %v3078, 0.0
      %v3111 = vmax.f32 %v3079, 0.0
      %v3112 = vmax.f32 %v3080, 0.0
      %v3113 = vmax.f32 %v3081, 0.0
      %v3114 = vmax.f32 %v3082, 0.0
      %v3115 = vmax.f32 %v3083, 0.0
      %v3116 = vmax.f32 %v3084, 0.0
      %v3117 = vmax.f32 %v3085, 0.0
      %v3118 = vmax.f32 %v3086, 0.0
      %v3119 = vmax.f32 %v3087, 0.0
      %v3120 = vmax.f32 %v3088, 0.0
      %v3121 = vmax.f32 %v3089, 0.0
      %v3122 = vmax.f32 %v3090, 0.0
      %v3123 = vmax.f32 %v3091, 0.0
      %v3124 = vmax.f32 %v3092, 0.0
      %v3125 = vmax.f32 %v3093, 0.0
      %v3126 = vmax.f32 %v3094, 0.0
      %v3127 = vmax.f32 %v3095, 0.0
      %v3128 = vmax.f32 %v3096, 0.0
      %v3129 = vmax.f32 %v3097, 0.0
      %v3130 = vmax.f32 %v3098, 0.0
      %v3131 = vmax.f32 %v3099, 0.0
      %v3132 = vmax.f32 %v3100, 0.0
      %v3133 = vmax.f32 %v3101, 0.0
      %v3134 = vmax.f32 %v3102, 0.0
      %v3135 = vmax.f32 %v3103, 0.0
      %v3136 = vmax.f32 %v3104, 0.0
      %v3137 = vmax.f32 %v3105, 0.0
      %3138 = vst.msk [vmem:[%s359] sm:$0xff] %vm394, %v3106
      %3139 = vst.msk [vmem:[%s359 + $0x8] sm:$0xff] %vm394, %v3107
      %3140 = vst.msk [vmem:[%s359 + $0x10] sm:$0xff] %vm394, %v3108
      %3141 = vst.msk [vmem:[%s359 + $0x18] sm:$0xff] %vm394, %v3109
      %3142 = vst.msk [vmem:[%s359 + $0x20] sm:$0xff] %vm394, %v3110
      %3143 = vst.msk [vmem:[%s359 + $0x28] sm:$0xff] %vm394, %v3111
      %3144 = vst.msk [vmem:[%s359 + $0x30] sm:$0xff] %vm394, %v3112
      %3145 = vst.msk [vmem:[%s359 + $0x38] sm:$0xff] %vm394, %v3113
      %3146 = vst.msk [vmem:[%s359 + $0x40] sm:$0xff] %vm394, %v3114
      %3147 = vst.msk [vmem:[%s359 + $0x48] sm:$0xff] %vm394, %v3115
      %3148 = vst.msk [vmem:[%s359 + $0x50] sm:$0xff] %vm394, %v3116
      %3149 = vst.msk [vmem:[%s359 + $0x58] sm:$0xff] %vm394, %v3117
      %3150 = vst.msk [vmem:[%s359 + $0x60] sm:$0xff] %vm394, %v3118
      %3151 = vst.msk [vmem:[%s359 + $0x68] sm:$0xff] %vm394, %v3119
      %3152 = vst.msk [vmem:[%s359 + $0x70] sm:$0xff] %vm394, %v3120
      %3153 = vst.msk [vmem:[%s359 + $0x78] sm:$0xff] %vm394, %v3121
      %3154 = vst.msk [vmem:[%s359 + $0x80] sm:$0xff] %vm394, %v3122
      %3155 = vst.msk [vmem:[%s359 + $0x88] sm:$0xff] %vm394, %v3123
      %3156 = vst.msk [vmem:[%s359 + $0x90] sm:$0xff] %vm394, %v3124
      %3157 = vst.msk [vmem:[%s359 + $0x98] sm:$0xff] %vm394, %v3125
      %3158 = vst.msk [vmem:[%s359 + $0xa0] sm:$0xff] %vm394, %v3126
      %3159 = vst.msk [vmem:[%s359 + $0xa8] sm:$0xff] %vm394, %v3127
      %3160 = vst.msk [vmem:[%s359 + $0xb0] sm:$0xff] %vm394, %v3128
      %3161 = vst.msk [vmem:[%s359 + $0xb8] sm:$0xff] %vm394, %v3129
      %3162 = vst.msk [vmem:[%s359 + $0xc0] sm:$0xff] %vm394, %v3130
      %3163 = vst.msk [vmem:[%s359 + $0xc8] sm:$0xff] %vm394, %v3131
      %3164 = vst.msk [vmem:[%s359 + $0xd0] sm:$0xff] %vm394, %v3132
      %3165 = vst.msk [vmem:[%s359 + $0xd8] sm:$0xff] %vm394, %v3133
      %3166 = vst.msk [vmem:[%s359 + $0xe0] sm:$0xff] %vm394, %v3134
      %3167 = vst.msk [vmem:[%s359 + $0xe8] sm:$0xff] %vm394, %v3135
      %3168 = vst.msk [vmem:[%s359 + $0xf0] sm:$0xff] %vm394, %v3136
      %3169 = vst.msk [vmem:[%s359 + $0xf8] sm:$0xff] %vm394, %v3137
      %p3170 = scmp.lt.s32.totalorder %s21, 1
      %s3171 = scalar_select %p3170, %s21, 1
      %s3172 = smul.addr %s3171, 32
      %s3173 = smul.addr %s3172, 8
      %s3174 = scalar_lea.vmem %s10, %s3173
      // Predicated region
      $region61: #{bottleneck_forward.1} parent=59 // pred_check
        %p3175 = pneg %p254
      $region62: #{bottleneck_forward.1} parent=59 // pred_check_branch
        %3177 = sbr.rel (%p3175) target = $region64
      $region63: #{bottleneck_forward.1} parent=59 // pred_region
        _
      $region64: #{bottleneck_forward.1} parent=59 // pred_fallthru
        _
    $region60: #{bottleneck_forward.1} parent=5 // pred_fallthru
      _
    %p3178 = scmp.le.s32.totalorder 2, %s16
    // Predicated region
    $region65: #{bottleneck_forward.1} parent=5 // pred_check
      %p3179 = pneg %p3178
    $region66: #{bottleneck_forward.1} parent=5 // pred_check_branch
      %3181 = sbr.rel (%p3179) target = $region68
    $region67: #{bottleneck_forward.1} parent=5 // pred_region
      %s3182 = ssub.s32 %s16, 2
      // Predicated region
      $region69: #{bottleneck_forward.1} parent=67 // pred_check
        %p3183 = pneg %p260
      $region70: #{bottleneck_forward.1} parent=67 // pred_check_branch
        %3185 = sbr.rel (%p3183) target = $region72
      $region71: #{bottleneck_forward.1} parent=67 // pred_region
        %p3186 = scmp.lt.s32.totalorder %s22, 1
        %s3187 = scalar_select %p3186, %s22, 1
        %s3188 = smul.addr %s3187, 32
        %s3189 = smul.addr %s3188, 8
        %s3190 = scalar_lea.vmem %s10, %s3189
      $region72: #{bottleneck_forward.1} parent=67 // pred_fallthru
        _
    $region68: #{bottleneck_forward.1} parent=5 // pred_fallthru
      _
  $region6: #{bottleneck_forward.1} parent=0 // loop_footer
    %s20 = sadd.s32 1, %s16
  $region7: #{bottleneck_forward.1} parent=0 // loop_footer_branch
    %15 = sbr.rel target = $region3
  $region8: #{bottleneck_forward.1} parent=0 // loop_exit
    _

</llo_original>
